<compile_context>
chip_gen: v6e
topology: v6e:2x2x1
jax: 0.10.0
libtpu: 0.0.40
codegen_flags: <defaults>
</compile_context>

<pallas_src>
import functools

import numpy as np
import jax
import jax.numpy as jnp
from jax.experimental import pallas as pl
from jax.experimental.pallas import tpu as pltpu


# ---------------------------------------------------------------------------
# Host-side static helpers
# ---------------------------------------------------------------------------
def _boundary_masks(H, W):
    """(4, H*W) f32 validity masks for shifted maps.

    Rows: [Dy=-1 valid, Dy=+1 valid, Dx=-1 valid, Dx=+1 valid] over the
    flattened (p*W + q) spatial index.  Computed on host (static shapes), so
    the kernel never emits iota / integer-division code.
    """
    p = np.arange(H)[:, None]
    q = np.arange(W)[None, :]
    ones_r = np.ones((H, 1), np.float32)
    ones_c = np.ones((1, W), np.float32)
    m = np.stack([
        ((p >= 1).astype(np.float32) * ones_c).reshape(-1),
        ((p <= H - 2).astype(np.float32) * ones_c).reshape(-1),
        (ones_r * (q >= 1).astype(np.float32)).reshape(-1),
        (ones_r * (q <= W - 2).astype(np.float32)).reshape(-1),
    ], axis=0)
    return jnp.asarray(m, jnp.float32)


# For phase (a,b) (pi = 2a+b), tap t = 2*iy+ix multiplies the input shifted by
# (Dy, Dx) = (a-1+iy, b-1+ix).
_PHASE_TAP_OFFSETS = tuple(
    tuple((a - 1 + iy, b - 1 + ix) for iy in (0, 1) for ix in (0, 1))
    for a in (0, 1) for b in (0, 1)
)

# Which high-res kernel rows/cols (dy/dx in 0..2) fold into each low-res tap.
_FOLD_SETS = {0: ([0], [1, 2]),   # phase offset a=0: Dy=-1 <- {0}, Dy=0 <- {1,2}
              1: ([0, 1], [2])}   # phase offset a=1: Dy=0 <- {0,1}, Dy=+1 <- {2}


def _phase_fold_weights(w_oihw):
    """Fold nearest-2x upsample + 3x3 conv into 4 per-phase 2x2 convs.

    w_oihw: (Cout, Cin, 3, 3) -> (4 phases, 4 taps, Cout, Cin).
    """
    phases = []
    for a in (0, 1):
        for b in (0, 1):
            taps = []
            for iy in (0, 1):
                for ix in (0, 1):
                    w = 0.0
                    for dy in _FOLD_SETS[a][iy]:
                        for dx in _FOLD_SETS[b][ix]:
                            w = w + w_oihw[:, :, dy, dx]
                    taps.append(w)
            phases.append(jnp.stack(taps, axis=0))
    return jnp.stack(phases, axis=0)


# ---------------------------------------------------------------------------
# Fused kernel (one batch element per grid step; all shapes static)
# ---------------------------------------------------------------------------
def _make_kernel(H0, W0, E, num_up, mxu_dtype):
    n_res = max(num_up, 1)
    all_offsets = tuple((dy, dx) for dy in (-1, 0, 1) for dx in (-1, 0, 1))

    def shifted_maps(x, W, mask):
        # x: (C, N) f32 channel-major.  Returns {(Dy,Dx): (C, N) mxu_dtype}
        # where each map is x shifted by (Dy, Dx) with zero boundary handling.
        N = x.shape[1]
        row_m = {-1: mask[0:1], 1: mask[1:2]}
        col_m = {-1: mask[2:3], 1: mask[3:4]}
        out = {}
        for (Dy, Dx) in all_offsets:
            off = Dy * W + Dx
            s = x if off == 0 else pltpu.roll(x, shift=(-off) % N, axis=1)
            if Dy != 0:
                s = s * row_m[Dy]
            if Dx != 0:
                s = s * col_m[Dx]
            out[(Dy, Dx)] = s.astype(mxu_dtype)
        return out

    def conv_in_3x3(x, W, w_taps, mask):
        # Plain 3x3 conv (SAME zero pad, no bias) + ReLU.  One small
        # (E,Cin)@(Cin,N) MXU dot per tap, accumulated in f32.
        smaps = shifted_maps(x, W, mask)
        acc = None
        for dy in range(3):
            for dx in range(3):
                c = jnp.dot(w_taps[dy * 3 + dx], smaps[(dy - 1, dx - 1)],
                            preferred_element_type=jnp.float32)
                acc = c if acc is None else acc + c
        return jnp.maximum(acc, 0.0)

    def up_block(x, W, w_phase, bias, mask):
        # nearest-2x upsample folded into the 3x3 conv: 4 sub-pixel phase
        # outputs at the *input* resolution (no upsampled tensor is built).
        smaps = shifted_maps(x, W, mask)
        phases = []
        for pi in range(4):
            acc = None
            for ti, (Dy, Dx) in enumerate(_PHASE_TAP_OFFSETS[pi]):
                c = jnp.dot(w_phase[pi, ti], smaps[(Dy, Dx)],
                            preferred_element_type=jnp.float32)
                acc = c if acc is None else acc + c
            phases.append(jnp.maximum(acc + bias, 0.0))
        return phases

    def interleave_phases(ph, C, H, W):
        # Only traced when num_up >= 2 (not the default / test config).
        p00, p01, p10, p11 = [p.reshape(C, H, W) for p in ph]
        r0 = jnp.stack([p00, p01], axis=-1).reshape(C, H, 2 * W)
        r1 = jnp.stack([p10, p11], axis=-1).reshape(C, H, 2 * W)
        y = jnp.stack([r0, r1], axis=2).reshape(C, 2 * H, 2 * W)
        return y.reshape(C, 4 * H * W)

    def pool2x2(x, C, H, W):
        # bilinear x0.5 (align_corners=False) == exact 2x2 mean.
        # Only traced when num_up >= 2.
        x = x.reshape(C, H // 2, 2, W // 2, 2)
        x = (x[:, :, 0, :, 0] + x[:, :, 0, :, 1]
             + x[:, :, 1, :, 0] + x[:, :, 1, :, 1]) * 0.25
        return x.reshape(C, (H // 2) * (W // 2))

    def kernel(*refs):
        x_ref = refs[0]                                   # (1, Cin, H0*W0) f32
        mask_refs = refs[1:1 + n_res]                     # (4, Hi*Wi) f32 each
        w_in_ref = refs[1 + n_res]                        # (9, E, Cin)   mxu
        mid = refs[2 + n_res:2 + n_res + 2 * num_up]      # (4,4,E,E)/(E,1) per block
        w_out_ref = refs[2 + n_res + 2 * num_up]          # (ncls, E)     mxu
        b_out_ref = refs[3 + n_res + 2 * num_up]          # (ncls, 1)     f32
        preds_ref = refs[4 + n_res + 2 * num_up]          # (1, P, ncls, hw)
        seg_ref = refs[5 + n_res + 2 * num_up]            # (1, E, H0*W0)

        w_out = w_out_ref[...]
        b_out = b_out_ref[...]

        # x = relu(conv_in(x))   (conv_in has bias=False in PyTorch)
        x = conv_in_3x3(x_ref[0], W0, w_in_ref[...], mask_refs[0][...])

        if num_up == 0:
            preds_ref[0, 0] = jnp.dot(w_out, x.astype(mxu_dtype),
                                      preferred_element_type=jnp.float32) + b_out
            seg_ref[0] = x
            return

        H, W = H0, W0
        phases = None
        for i in range(num_up):
            phases = up_block(x, W, mid[2 * i][...], mid[2 * i + 1][...],
                              mask_refs[i][...])
            if i < num_up - 1:
                x = interleave_phases(phases, E, H, W)
                H, W = 2 * H, 2 * W

        # conv_out (1x1) per phase, channel-major -> lane-dense stores.
        for pi in range(4):
            preds_ref[0, pi] = jnp.dot(w_out, phases[pi].astype(mxu_dtype),
                                       preferred_element_type=jnp.float32) + b_out

        # seg_feats: first bilinear-x0.5 == mean of the 4 phases (exact);
        # remaining levels (num_up >= 2 only) are plain 2x2 means.
        seg = (phases[0] + phases[1] + phases[2] + phases[3]) * 0.25
        sh, sw = H, W
        for _ in range(num_up - 1):
            seg = pool2x2(seg, E, sh, sw)
            sh, sw = sh // 2, sw // 2
        seg_ref[0] = seg

    return kernel


# ---------------------------------------------------------------------------
# Forward wrapper (forward_test semantics; NCHW in / NCHW out like PyTorch)
# ---------------------------------------------------------------------------
def map_seg_head_forward(params, bev_features, mxu_dtype=jnp.bfloat16):
    """MapSegHead.forward_test -> (preds, seg_feats), both NCHW f32.

    mxu_dtype controls the matmul-operand dtype only (accumulation is f32);
    pass jnp.float32 for bit-tight numerics.
    """
    B, Cin, H0, W0 = bev_features.shape
    w_in = params["conv_in_w"]                            # (E, Cin, 3, 3) OIHW
    E = w_in.shape[0]
    w_out = params["conv_out_w"]                          # (ncls, E)
    ncls = w_out.shape[0]
    num_up = len(params["mid"])
    Hc, Wc = H0 << num_up, W0 << num_up

    # Channel-major (C, H*W) is exactly NCHW flattened -> free reshape, no
    # input transpose.
    x = bev_features.reshape(B, Cin, H0 * W0).astype(jnp.float32)

    # Weights are cast to the MXU operand dtype once, here (not per grid step).
    w_in_taps = jnp.transpose(w_in, (2, 3, 0, 1)).reshape(9, E, Cin).astype(mxu_dtype)
    w_out_k = w_out.astype(mxu_dtype)
    b_out_k = params["conv_out_b"].reshape(ncls, 1).astype(jnp.float32)

    n_res = max(num_up, 1)
    masks = [_boundary_masks(H0 << i, W0 << i) for i in range(n_res)]

    mid_args = []
    for (w, b) in params["mid"]:
        mid_args.append(_phase_fold_weights(w).astype(mxu_dtype))     # (4,4,E,E)
        mid_args.append(b.reshape(E, 1).astype(jnp.float32))

    args = [x] + masks + [w_in_taps] + mid_args + [w_out_k, b_out_k]

    def const_spec(a):
        nd = a.ndim
        return pl.BlockSpec(a.shape, lambda b: (0,) * nd)

    in_specs = [pl.BlockSpec((1, Cin, H0 * W0), lambda b: (b, 0, 0))]
    in_specs += [const_spec(a) for a in args[1:]]

    P = 4 if num_up >= 1 else 1
    h_last = (Hc // 2) if num_up >= 1 else H0
    w_last = (Wc // 2) if num_up >= 1 else W0
    hw = h_last * w_last

    kernel = _make_kernel(H0, W0, E, num_up, mxu_dtype)

    flops = 2 * B * (9 * Cin * E * H0 * W0
                     + sum(16 * E * E * (H0 << i) * (W0 << i) for i in range(num_up))
                     + E * ncls * Hc * Wc)
    bytes_acc = (x.size * 4
                 + sum(int(a.size) * a.dtype.itemsize for a in args[1:])
                 + B * (P * ncls * hw + E * H0 * W0) * 4)

    preds_pm, seg = pl.pallas_call(
        kernel,
        grid=(B,),
        in_specs=in_specs,
        out_specs=(pl.BlockSpec((1, P, ncls, hw), lambda b: (b, 0, 0, 0)),
                   pl.BlockSpec((1, E, H0 * W0), lambda b: (b, 0, 0))),
        out_shape=(jax.ShapeDtypeStruct((B, P, ncls, hw), jnp.float32),
                   jax.ShapeDtypeStruct((B, E, H0 * W0), jnp.float32)),
        compiler_params=pltpu.CompilerParams(
            dimension_semantics=("parallel",),
            vmem_limit_bytes=32 * 1024 * 1024),
        cost_estimate=pl.CostEstimate(flops=flops, transcendentals=0,
                                      bytes_accessed=bytes_acc),
    )(*args)

    if num_up == 0:
        preds = preds_pm.reshape(B, ncls, H0, W0)
    else:
        # De-interleave the 4 sub-pixel phases of the tiny ncls-channel map
        # (wrapper-side XLA transpose; the large E-channel activations never
        # need interleaving).
        preds = preds_pm.reshape(B, 2, 2, ncls, h_last, w_last)
        preds = jnp.transpose(preds, (0, 3, 4, 1, 5, 2)).reshape(B, ncls, Hc, Wc)
    seg_feats = seg.reshape(B, E, H0, W0)
    return preds, seg_feats


# ---------------------------------------------------------------------------
# Parameters + pure-JAX reference (runtime correctness check)
# ---------------------------------------------------------------------------
def bias_init_with_prob(p):
    return float(-np.log((1.0 - p) / p))


def init_params(key, in_channels, embed_dims, num_up_blocks, cls_out_channels):
    keys = jax.random.split(key, 2 * num_up_blocks + 2)
    s = 0.05
    params = {
        # conv_in: Conv2d(in, embed, 3, padding=1, bias=False), OIHW (PyTorch layout)
        "conv_in_w": s * jax.random.normal(keys[0], (embed_dims, in_channels, 3, 3), jnp.float32),
        "mid": [],
        # conv_out: Conv2d(embed, cls_out, 1) with sigmoid-focal bias init
        "conv_out_w": s * jax.random.normal(keys[-1], (cls_out_channels, embed_dims), jnp.float32),
        "conv_out_b": jnp.full((cls_out_channels,), bias_init_with_prob(0.01), jnp.float32),
    }
    for i in range(num_up_blocks):
        w = s * jax.random.normal(keys[1 + 2 * i], (embed_dims, embed_dims, 3, 3), jnp.float32)
        b = s * jax.random.normal(keys[2 + 2 * i], (embed_dims,), jnp.float32)
        params["mid"].append((w, b))
    return params


def _reference_forward(params, x_nchw):
    """Plain-JAX/XLA reference of the same forward_test path (f32)."""
    hi = jax.lax.Precision.HIGHEST

    def conv3x3(x, w_oihw, bias):
        y = jax.lax.conv_general_dilated(
            x, w_oihw, window_strides=(1, 1), padding="SAME",
            dimension_numbers=("NCHW", "OIHW", "NCHW"), precision=hi)
        if bias is not None:
            y = y + bias[None, :, None, None]
        return y

    x = jax.nn.relu(conv3x3(x_nchw, params["conv_in_w"], None))
    for (w, b) in params["mid"]:
        x = jnp.repeat(jnp.repeat(x, 2, axis=2), 2, axis=3)          # nearest 2x
        x = jax.nn.relu(conv3x3(x, w, b))
    preds = jnp.einsum("bchw,dc->bdhw", x, params["conv_out_w"], precision=hi)
    preds = preds + params["conv_out_b"][None, :, None, None]
    seg = x
    for _ in params["mid"]:
        B, C, Hh, Ww = seg.shape
        seg = seg.reshape(B, C, Hh // 2, 2, Ww // 2, 2).mean(axis=(3, 5))
    return preds, seg


if __name__ == "__main__":
    # Small shapes consistent with the module: bev_size=(16,16), canvas=(32,32)
    # => num_up_blocks = log2(32/16) = 1; use_sigmoid=True => cls_out = num_classes.
    B, Cin, H, W = 2, 4, 16, 16
    embed_dims, num_classes = 8, 3
    canvas = (2 * H, 2 * W)
    num_up_blocks = int(np.log2(canvas[0] // H))

    key = jax.random.PRNGKey(0)
    kx, kp = jax.random.split(key)
    bev_features = jax.random.normal(kx, (B, Cin, H, W), jnp.float32)   # NCHW, like PyTorch
    params = init_params(kp, Cin, embed_dims, num_up_blocks, num_classes)

    # Default path: bf16 MXU operands, f32 accumulation.
    fwd = jax.jit(map_seg_head_forward)
    preds, seg_feats = jax.block_until_ready(fwd(params, bev_features))

    assert preds.shape == (B, num_classes, canvas[0], canvas[1]), preds.shape
    assert seg_feats.shape == (B, embed_dims, H, W), seg_feats.shape
    assert preds.dtype == jnp.float32 and seg_feats.dtype == jnp.float32

    preds_ref, seg_ref = _reference_forward(params, bev_features)

    # bf16-operand path: loose tolerance (bf16 rounding of operands only).
    np.testing.assert_allclose(np.asarray(preds), np.asarray(preds_ref), rtol=5e-2, atol=1e-2)
    np.testing.assert_allclose(np.asarray(seg_feats), np.asarray(seg_ref), rtol=5e-2, atol=1e-2)

    # f32 path: tight tolerance (guards tap-order / layout / mask regressions).
    fwd_f32 = jax.jit(functools.partial(map_seg_head_forward, mxu_dtype=jnp.float32))
    preds32, seg32 = jax.block_until_ready(fwd_f32(params, bev_features))
    np.testing.assert_allclose(np.asarray(preds32), np.asarray(preds_ref), rtol=1e-4, atol=1e-5)
    np.testing.assert_allclose(np.asarray(seg32), np.asarray(seg_ref), rtol=1e-4, atol=1e-5)

    print("KERNEL_OK")
</pallas_src>

<mosaic_0001>
module attributes {stable_mosaic.version = 11 : i64} {
  func.func @kernel(%arg0: i32, %arg1: memref<1x4x256xf32, #tpu.memory_space<vmem>>, %arg2: memref<4x256xf32, #tpu.memory_space<vmem>>, %arg3: memref<9x8x4xbf16, #tpu.memory_space<vmem>>, %arg4: memref<4x4x8x8xbf16, #tpu.memory_space<vmem>>, %arg5: memref<8x1xf32, #tpu.memory_space<vmem>>, %arg6: memref<3x8xbf16, #tpu.memory_space<vmem>>, %arg7: memref<3x1xf32, #tpu.memory_space<vmem>>, %arg8: memref<1x4x3x256xf32, #tpu.memory_space<vmem>>, %arg9: memref<1x8x256xf32, #tpu.memory_space<vmem>>) attributes {dimension_semantics = [#tpu.dimension_semantics<parallel>], iteration_bounds = array<i64: 2>, scalar_prefetch = 0 : i64, scratch_operands = 0 : i64, tpu.core_type = #tpu.core_type<tc>, window_params = [{transform_indices = @transform_0, window_bounds = array<i64: 1, 4, 256>}, {pipeline_mode = #tpu.pipeline_mode<synchronous>, transform_indices = @transform_1, window_bounds = array<i64: 4, 256>}, {pipeline_mode = #tpu.pipeline_mode<synchronous>, transform_indices = @transform_2, window_bounds = array<i64: 9, 8, 4>}, {pipeline_mode = #tpu.pipeline_mode<synchronous>, transform_indices = @transform_3, window_bounds = array<i64: 4, 4, 8, 8>}, {pipeline_mode = #tpu.pipeline_mode<synchronous>, transform_indices = @transform_4, window_bounds = array<i64: 8, 1>}, {pipeline_mode = #tpu.pipeline_mode<synchronous>, transform_indices = @transform_5, window_bounds = array<i64: 3, 8>}, {pipeline_mode = #tpu.pipeline_mode<synchronous>, transform_indices = @transform_6, window_bounds = array<i64: 3, 1>}, {transform_indices = @transform_7, window_bounds = array<i64: 1, 4, 3, 256>}, {transform_indices = @transform_8, window_bounds = array<i64: 1, 8, 256>}]} {
    %c0 = arith.constant 0 : index
    %c0_0 = arith.constant 0 : index
    %0 = vector.load %arg6[%c0, %c0_0] : memref<3x8xbf16, #tpu.memory_space<vmem>>, vector<3x8xbf16>
    %c0_1 = arith.constant 0 : index
    %c0_2 = arith.constant 0 : index
    %1 = vector.load %arg7[%c0_1, %c0_2] : memref<3x1xf32, #tpu.memory_space<vmem>>, vector<3x1xf32>
    %c0_3 = arith.constant 0 : index
    %c0_4 = arith.constant 0 : index
    %c0_5 = arith.constant 0 : index
    %2 = vector.load %arg1[%c0_3, %c0_4, %c0_5] : memref<1x4x256xf32, #tpu.memory_space<vmem>>, vector<1x4x256xf32>
    %3 = vector.shape_cast %2 : vector<1x4x256xf32> to vector<4x256xf32>
    %c0_6 = arith.constant 0 : index
    %c0_7 = arith.constant 0 : index
    %c0_8 = arith.constant 0 : index
    %4 = vector.load %arg3[%c0_6, %c0_7, %c0_8] : memref<9x8x4xbf16, #tpu.memory_space<vmem>>, vector<9x8x4xbf16>
    %c0_9 = arith.constant 0 : index
    %c0_10 = arith.constant 0 : index
    %5 = vector.load %arg2[%c0_9, %c0_10] : memref<4x256xf32, #tpu.memory_space<vmem>>, vector<4x256xf32>
    %6 = vector.extract_strided_slice %5 {offsets = [0, 0], sizes = [1, 256], strides = [1, 1]} : vector<4x256xf32> to vector<1x256xf32>
    %7 = vector.extract_strided_slice %5 {offsets = [1, 0], sizes = [1, 256], strides = [1, 1]} : vector<4x256xf32> to vector<1x256xf32>
    %8 = vector.extract_strided_slice %5 {offsets = [2, 0], sizes = [1, 256], strides = [1, 1]} : vector<4x256xf32> to vector<1x256xf32>
    %9 = vector.extract_strided_slice %5 {offsets = [3, 0], sizes = [1, 256], strides = [1, 1]} : vector<4x256xf32> to vector<1x256xf32>
    %c17_i32 = arith.constant 17 : i32
    %10 = tpu.dynamic_rotate %3 by %c17_i32 dim 1 : vector<4x256xf32>, i32 -> vector<4x256xf32>
    %11 = vector.broadcast %6 : vector<1x256xf32> to vector<4x256xf32>
    %12 = arith.mulf %10, %11 : vector<4x256xf32>
    %13 = vector.broadcast %8 : vector<1x256xf32> to vector<4x256xf32>
    %14 = arith.mulf %12, %13 : vector<4x256xf32>
    %15 = arith.truncf %14 : vector<4x256xf32> to vector<4x256xbf16>
    %c16_i32 = arith.constant 16 : i32
    %16 = tpu.dynamic_rotate %3 by %c16_i32 dim 1 : vector<4x256xf32>, i32 -> vector<4x256xf32>
    %17 = vector.broadcast %6 : vector<1x256xf32> to vector<4x256xf32>
    %18 = arith.mulf %16, %17 : vector<4x256xf32>
    %19 = arith.truncf %18 : vector<4x256xf32> to vector<4x256xbf16>
    %c15_i32 = arith.constant 15 : i32
    %20 = tpu.dynamic_rotate %3 by %c15_i32 dim 1 : vector<4x256xf32>, i32 -> vector<4x256xf32>
    %21 = vector.broadcast %6 : vector<1x256xf32> to vector<4x256xf32>
    %22 = arith.mulf %20, %21 : vector<4x256xf32>
    %23 = vector.broadcast %9 : vector<1x256xf32> to vector<4x256xf32>
    %24 = arith.mulf %22, %23 : vector<4x256xf32>
    %25 = arith.truncf %24 : vector<4x256xf32> to vector<4x256xbf16>
    %c1_i32 = arith.constant 1 : i32
    %26 = tpu.dynamic_rotate %3 by %c1_i32 dim 1 : vector<4x256xf32>, i32 -> vector<4x256xf32>
    %27 = vector.broadcast %8 : vector<1x256xf32> to vector<4x256xf32>
    %28 = arith.mulf %26, %27 : vector<4x256xf32>
    %29 = arith.truncf %28 : vector<4x256xf32> to vector<4x256xbf16>
    %30 = arith.truncf %3 : vector<4x256xf32> to vector<4x256xbf16>
    %c255_i32 = arith.constant 255 : i32
    %31 = tpu.dynamic_rotate %3 by %c255_i32 dim 1 : vector<4x256xf32>, i32 -> vector<4x256xf32>
    %32 = vector.broadcast %9 : vector<1x256xf32> to vector<4x256xf32>
    %33 = arith.mulf %31, %32 : vector<4x256xf32>
    %34 = arith.truncf %33 : vector<4x256xf32> to vector<4x256xbf16>
    %c241_i32 = arith.constant 241 : i32
    %35 = tpu.dynamic_rotate %3 by %c241_i32 dim 1 : vector<4x256xf32>, i32 -> vector<4x256xf32>
    %36 = vector.broadcast %7 : vector<1x256xf32> to vector<4x256xf32>
    %37 = arith.mulf %35, %36 : vector<4x256xf32>
    %38 = vector.broadcast %8 : vector<1x256xf32> to vector<4x256xf32>
    %39 = arith.mulf %37, %38 : vector<4x256xf32>
    %40 = arith.truncf %39 : vector<4x256xf32> to vector<4x256xbf16>
    %c240_i32 = arith.constant 240 : i32
    %41 = tpu.dynamic_rotate %3 by %c240_i32 dim 1 : vector<4x256xf32>, i32 -> vector<4x256xf32>
    %42 = vector.broadcast %7 : vector<1x256xf32> to vector<4x256xf32>
    %43 = arith.mulf %41, %42 : vector<4x256xf32>
    %44 = arith.truncf %43 : vector<4x256xf32> to vector<4x256xbf16>
    %c239_i32 = arith.constant 239 : i32
    %45 = tpu.dynamic_rotate %3 by %c239_i32 dim 1 : vector<4x256xf32>, i32 -> vector<4x256xf32>
    %46 = vector.broadcast %7 : vector<1x256xf32> to vector<4x256xf32>
    %47 = arith.mulf %45, %46 : vector<4x256xf32>
    %48 = vector.broadcast %9 : vector<1x256xf32> to vector<4x256xf32>
    %49 = arith.mulf %47, %48 : vector<4x256xf32>
    %50 = arith.truncf %49 : vector<4x256xf32> to vector<4x256xbf16>
    %51 = vector.extract_strided_slice %4 {offsets = [0, 0, 0], sizes = [1, 8, 4], strides = [1, 1, 1]} : vector<9x8x4xbf16> to vector<1x8x4xbf16>
    %52 = vector.shape_cast %51 : vector<1x8x4xbf16> to vector<8x4xbf16>
    %cst = arith.constant dense<0.000000e+00> : vector<8x256xf32>
    %53 = tpu.matmul %52, %15, %cst {dimension_numbers = #tpu.dot_dimension_numbers<[1], [0], [0], [1], [0, 0, 1, 1], [], []>} : vector<8x4xbf16>, vector<4x256xbf16>, vector<8x256xf32> -> vector<8x256xf32>
    %54 = vector.extract_strided_slice %4 {offsets = [1, 0, 0], sizes = [1, 8, 4], strides = [1, 1, 1]} : vector<9x8x4xbf16> to vector<1x8x4xbf16>
    %55 = vector.shape_cast %54 : vector<1x8x4xbf16> to vector<8x4xbf16>
    %cst_11 = arith.constant dense<0.000000e+00> : vector<8x256xf32>
    %56 = tpu.matmul %55, %19, %cst_11 {dimension_numbers = #tpu.dot_dimension_numbers<[1], [0], [0], [1], [0, 0, 1, 1], [], []>} : vector<8x4xbf16>, vector<4x256xbf16>, vector<8x256xf32> -> vector<8x256xf32>
    %57 = arith.addf %53, %56 : vector<8x256xf32>
    %58 = vector.extract_strided_slice %4 {offsets = [2, 0, 0], sizes = [1, 8, 4], strides = [1, 1, 1]} : vector<9x8x4xbf16> to vector<1x8x4xbf16>
    %59 = vector.shape_cast %58 : vector<1x8x4xbf16> to vector<8x4xbf16>
    %cst_12 = arith.constant dense<0.000000e+00> : vector<8x256xf32>
    %60 = tpu.matmul %59, %25, %cst_12 {dimension_numbers = #tpu.dot_dimension_numbers<[1], [0], [0], [1], [0, 0, 1, 1], [], []>} : vector<8x4xbf16>, vector<4x256xbf16>, vector<8x256xf32> -> vector<8x256xf32>
    %61 = arith.addf %57, %60 : vector<8x256xf32>
    %62 = vector.extract_strided_slice %4 {offsets = [3, 0, 0], sizes = [1, 8, 4], strides = [1, 1, 1]} : vector<9x8x4xbf16> to vector<1x8x4xbf16>
    %63 = vector.shape_cast %62 : vector<1x8x4xbf16> to vector<8x4xbf16>
    %cst_13 = arith.constant dense<0.000000e+00> : vector<8x256xf32>
    %64 = tpu.matmul %63, %29, %cst_13 {dimension_numbers = #tpu.dot_dimension_numbers<[1], [0], [0], [1], [0, 0, 1, 1], [], []>} : vector<8x4xbf16>, vector<4x256xbf16>, vector<8x256xf32> -> vector<8x256xf32>
    %65 = arith.addf %61, %64 : vector<8x256xf32>
    %66 = vector.extract_strided_slice %4 {offsets = [4, 0, 0], sizes = [1, 8, 4], strides = [1, 1, 1]} : vector<9x8x4xbf16> to vector<1x8x4xbf16>
    %67 = vector.shape_cast %66 : vector<1x8x4xbf16> to vector<8x4xbf16>
    %cst_14 = arith.constant dense<0.000000e+00> : vector<8x256xf32>
    %68 = tpu.matmul %67, %30, %cst_14 {dimension_numbers = #tpu.dot_dimension_numbers<[1], [0], [0], [1], [0, 0, 1, 1], [], []>} : vector<8x4xbf16>, vector<4x256xbf16>, vector<8x256xf32> -> vector<8x256xf32>
    %69 = arith.addf %65, %68 : vector<8x256xf32>
    %70 = vector.extract_strided_slice %4 {offsets = [5, 0, 0], sizes = [1, 8, 4], strides = [1, 1, 1]} : vector<9x8x4xbf16> to vector<1x8x4xbf16>
    %71 = vector.shape_cast %70 : vector<1x8x4xbf16> to vector<8x4xbf16>
    %cst_15 = arith.constant dense<0.000000e+00> : vector<8x256xf32>
    %72 = tpu.matmul %71, %34, %cst_15 {dimension_numbers = #tpu.dot_dimension_numbers<[1], [0], [0], [1], [0, 0, 1, 1], [], []>} : vector<8x4xbf16>, vector<4x256xbf16>, vector<8x256xf32> -> vector<8x256xf32>
    %73 = arith.addf %69, %72 : vector<8x256xf32>
    %74 = vector.extract_strided_slice %4 {offsets = [6, 0, 0], sizes = [1, 8, 4], strides = [1, 1, 1]} : vector<9x8x4xbf16> to vector<1x8x4xbf16>
    %75 = vector.shape_cast %74 : vector<1x8x4xbf16> to vector<8x4xbf16>
    %cst_16 = arith.constant dense<0.000000e+00> : vector<8x256xf32>
    %76 = tpu.matmul %75, %40, %cst_16 {dimension_numbers = #tpu.dot_dimension_numbers<[1], [0], [0], [1], [0, 0, 1, 1], [], []>} : vector<8x4xbf16>, vector<4x256xbf16>, vector<8x256xf32> -> vector<8x256xf32>
    %77 = arith.addf %73, %76 : vector<8x256xf32>
    %78 = vector.extract_strided_slice %4 {offsets = [7, 0, 0], sizes = [1, 8, 4], strides = [1, 1, 1]} : vector<9x8x4xbf16> to vector<1x8x4xbf16>
    %79 = vector.shape_cast %78 : vector<1x8x4xbf16> to vector<8x4xbf16>
    %cst_17 = arith.constant dense<0.000000e+00> : vector<8x256xf32>
    %80 = tpu.matmul %79, %44, %cst_17 {dimension_numbers = #tpu.dot_dimension_numbers<[1], [0], [0], [1], [0, 0, 1, 1], [], []>} : vector<8x4xbf16>, vector<4x256xbf16>, vector<8x256xf32> -> vector<8x256xf32>
    %81 = arith.addf %77, %80 : vector<8x256xf32>
    %82 = vector.extract_strided_slice %4 {offsets = [8, 0, 0], sizes = [1, 8, 4], strides = [1, 1, 1]} : vector<9x8x4xbf16> to vector<1x8x4xbf16>
    %83 = vector.shape_cast %82 : vector<1x8x4xbf16> to vector<8x4xbf16>
    %cst_18 = arith.constant dense<0.000000e+00> : vector<8x256xf32>
    %84 = tpu.matmul %83, %50, %cst_18 {dimension_numbers = #tpu.dot_dimension_numbers<[1], [0], [0], [1], [0, 0, 1, 1], [], []>} : vector<8x4xbf16>, vector<4x256xbf16>, vector<8x256xf32> -> vector<8x256xf32>
    %85 = arith.addf %81, %84 : vector<8x256xf32>
    %cst_19 = arith.constant 0.000000e+00 : f32
    %86 = vector.broadcast %cst_19 : f32 to vector<8x256xf32>
    %87 = arith.maximumf %85, %86 : vector<8x256xf32>
    %c0_20 = arith.constant 0 : index
    %c0_21 = arith.constant 0 : index
    %c0_22 = arith.constant 0 : index
    %c0_23 = arith.constant 0 : index
    %88 = vector.load %arg4[%c0_20, %c0_21, %c0_22, %c0_23] : memref<4x4x8x8xbf16, #tpu.memory_space<vmem>>, vector<4x4x8x8xbf16>
    %c0_24 = arith.constant 0 : index
    %c0_25 = arith.constant 0 : index
    %89 = vector.load %arg5[%c0_24, %c0_25] : memref<8x1xf32, #tpu.memory_space<vmem>>, vector<8x1xf32>
    %c0_26 = arith.constant 0 : index
    %c0_27 = arith.constant 0 : index
    %90 = vector.load %arg2[%c0_26, %c0_27] : memref<4x256xf32, #tpu.memory_space<vmem>>, vector<4x256xf32>
    %91 = vector.extract_strided_slice %90 {offsets = [0, 0], sizes = [1, 256], strides = [1, 1]} : vector<4x256xf32> to vector<1x256xf32>
    %92 = vector.extract_strided_slice %90 {offsets = [1, 0], sizes = [1, 256], strides = [1, 1]} : vector<4x256xf32> to vector<1x256xf32>
    %93 = vector.extract_strided_slice %90 {offsets = [2, 0], sizes = [1, 256], strides = [1, 1]} : vector<4x256xf32> to vector<1x256xf32>
    %94 = vector.extract_strided_slice %90 {offsets = [3, 0], sizes = [1, 256], strides = [1, 1]} : vector<4x256xf32> to vector<1x256xf32>
    %c17_i32_28 = arith.constant 17 : i32
    %95 = tpu.dynamic_rotate %87 by %c17_i32_28 dim 1 : vector<8x256xf32>, i32 -> vector<8x256xf32>
    %96 = vector.broadcast %91 : vector<1x256xf32> to vector<8x256xf32>
    %97 = arith.mulf %95, %96 : vector<8x256xf32>
    %98 = vector.broadcast %93 : vector<1x256xf32> to vector<8x256xf32>
    %99 = arith.mulf %97, %98 : vector<8x256xf32>
    %100 = arith.truncf %99 : vector<8x256xf32> to vector<8x256xbf16>
    %c16_i32_29 = arith.constant 16 : i32
    %101 = tpu.dynamic_rotate %87 by %c16_i32_29 dim 1 : vector<8x256xf32>, i32 -> vector<8x256xf32>
    %102 = vector.broadcast %91 : vector<1x256xf32> to vector<8x256xf32>
    %103 = arith.mulf %101, %102 : vector<8x256xf32>
    %104 = arith.truncf %103 : vector<8x256xf32> to vector<8x256xbf16>
    %c15_i32_30 = arith.constant 15 : i32
    %105 = tpu.dynamic_rotate %87 by %c15_i32_30 dim 1 : vector<8x256xf32>, i32 -> vector<8x256xf32>
    %106 = vector.broadcast %91 : vector<1x256xf32> to vector<8x256xf32>
    %107 = arith.mulf %105, %106 : vector<8x256xf32>
    %108 = vector.broadcast %94 : vector<1x256xf32> to vector<8x256xf32>
    %109 = arith.mulf %107, %108 : vector<8x256xf32>
    %110 = arith.truncf %109 : vector<8x256xf32> to vector<8x256xbf16>
    %c1_i32_31 = arith.constant 1 : i32
    %111 = tpu.dynamic_rotate %87 by %c1_i32_31 dim 1 : vector<8x256xf32>, i32 -> vector<8x256xf32>
    %112 = vector.broadcast %93 : vector<1x256xf32> to vector<8x256xf32>
    %113 = arith.mulf %111, %112 : vector<8x256xf32>
    %114 = arith.truncf %113 : vector<8x256xf32> to vector<8x256xbf16>
    %115 = arith.truncf %87 : vector<8x256xf32> to vector<8x256xbf16>
    %c255_i32_32 = arith.constant 255 : i32
    %116 = tpu.dynamic_rotate %87 by %c255_i32_32 dim 1 : vector<8x256xf32>, i32 -> vector<8x256xf32>
    %117 = vector.broadcast %94 : vector<1x256xf32> to vector<8x256xf32>
    %118 = arith.mulf %116, %117 : vector<8x256xf32>
    %119 = arith.truncf %118 : vector<8x256xf32> to vector<8x256xbf16>
    %c241_i32_33 = arith.constant 241 : i32
    %120 = tpu.dynamic_rotate %87 by %c241_i32_33 dim 1 : vector<8x256xf32>, i32 -> vector<8x256xf32>
    %121 = vector.broadcast %92 : vector<1x256xf32> to vector<8x256xf32>
    %122 = arith.mulf %120, %121 : vector<8x256xf32>
    %123 = vector.broadcast %93 : vector<1x256xf32> to vector<8x256xf32>
    %124 = arith.mulf %122, %123 : vector<8x256xf32>
    %125 = arith.truncf %124 : vector<8x256xf32> to vector<8x256xbf16>
    %c240_i32_34 = arith.constant 240 : i32
    %126 = tpu.dynamic_rotate %87 by %c240_i32_34 dim 1 : vector<8x256xf32>, i32 -> vector<8x256xf32>
    %127 = vector.broadcast %92 : vector<1x256xf32> to vector<8x256xf32>
    %128 = arith.mulf %126, %127 : vector<8x256xf32>
    %129 = arith.truncf %128 : vector<8x256xf32> to vector<8x256xbf16>
    %c239_i32_35 = arith.constant 239 : i32
    %130 = tpu.dynamic_rotate %87 by %c239_i32_35 dim 1 : vector<8x256xf32>, i32 -> vector<8x256xf32>
    %131 = vector.broadcast %92 : vector<1x256xf32> to vector<8x256xf32>
    %132 = arith.mulf %130, %131 : vector<8x256xf32>
    %133 = vector.broadcast %94 : vector<1x256xf32> to vector<8x256xf32>
    %134 = arith.mulf %132, %133 : vector<8x256xf32>
    %135 = arith.truncf %134 : vector<8x256xf32> to vector<8x256xbf16>
    %136 = vector.extract_strided_slice %88 {offsets = [0, 0, 0, 0], sizes = [1, 1, 8, 8], strides = [1, 1, 1, 1]} : vector<4x4x8x8xbf16> to vector<1x1x8x8xbf16>
    %137 = vector.shape_cast %136 : vector<1x1x8x8xbf16> to vector<8x8xbf16>
    %cst_36 = arith.constant dense<0.000000e+00> : vector<8x256xf32>
    %138 = tpu.matmul %137, %100, %cst_36 {dimension_numbers = #tpu.dot_dimension_numbers<[1], [0], [0], [1], [0, 0, 1, 1], [], []>} : vector<8x8xbf16>, vector<8x256xbf16>, vector<8x256xf32> -> vector<8x256xf32>
    %139 = vector.extract_strided_slice %88 {offsets = [0, 1, 0, 0], sizes = [1, 1, 8, 8], strides = [1, 1, 1, 1]} : vector<4x4x8x8xbf16> to vector<1x1x8x8xbf16>
    %140 = vector.shape_cast %139 : vector<1x1x8x8xbf16> to vector<8x8xbf16>
    %cst_37 = arith.constant dense<0.000000e+00> : vector<8x256xf32>
    %141 = tpu.matmul %140, %104, %cst_37 {dimension_numbers = #tpu.dot_dimension_numbers<[1], [0], [0], [1], [0, 0, 1, 1], [], []>} : vector<8x8xbf16>, vector<8x256xbf16>, vector<8x256xf32> -> vector<8x256xf32>
    %142 = arith.addf %138, %141 : vector<8x256xf32>
    %143 = vector.extract_strided_slice %88 {offsets = [0, 2, 0, 0], sizes = [1, 1, 8, 8], strides = [1, 1, 1, 1]} : vector<4x4x8x8xbf16> to vector<1x1x8x8xbf16>
    %144 = vector.shape_cast %143 : vector<1x1x8x8xbf16> to vector<8x8xbf16>
    %cst_38 = arith.constant dense<0.000000e+00> : vector<8x256xf32>
    %145 = tpu.matmul %144, %114, %cst_38 {dimension_numbers = #tpu.dot_dimension_numbers<[1], [0], [0], [1], [0, 0, 1, 1], [], []>} : vector<8x8xbf16>, vector<8x256xbf16>, vector<8x256xf32> -> vector<8x256xf32>
    %146 = arith.addf %142, %145 : vector<8x256xf32>
    %147 = vector.extract_strided_slice %88 {offsets = [0, 3, 0, 0], sizes = [1, 1, 8, 8], strides = [1, 1, 1, 1]} : vector<4x4x8x8xbf16> to vector<1x1x8x8xbf16>
    %148 = vector.shape_cast %147 : vector<1x1x8x8xbf16> to vector<8x8xbf16>
    %cst_39 = arith.constant dense<0.000000e+00> : vector<8x256xf32>
    %149 = tpu.matmul %148, %115, %cst_39 {dimension_numbers = #tpu.dot_dimension_numbers<[1], [0], [0], [1], [0, 0, 1, 1], [], []>} : vector<8x8xbf16>, vector<8x256xbf16>, vector<8x256xf32> -> vector<8x256xf32>
    %150 = arith.addf %146, %149 : vector<8x256xf32>
    %151 = vector.broadcast %89 : vector<8x1xf32> to vector<8x256xf32>
    %152 = arith.addf %150, %151 : vector<8x256xf32>
    %cst_40 = arith.constant 0.000000e+00 : f32
    %153 = vector.broadcast %cst_40 : f32 to vector<8x256xf32>
    %154 = arith.maximumf %152, %153 : vector<8x256xf32>
    %155 = vector.extract_strided_slice %88 {offsets = [1, 0, 0, 0], sizes = [1, 1, 8, 8], strides = [1, 1, 1, 1]} : vector<4x4x8x8xbf16> to vector<1x1x8x8xbf16>
    %156 = vector.shape_cast %155 : vector<1x1x8x8xbf16> to vector<8x8xbf16>
    %cst_41 = arith.constant dense<0.000000e+00> : vector<8x256xf32>
    %157 = tpu.matmul %156, %104, %cst_41 {dimension_numbers = #tpu.dot_dimension_numbers<[1], [0], [0], [1], [0, 0, 1, 1], [], []>} : vector<8x8xbf16>, vector<8x256xbf16>, vector<8x256xf32> -> vector<8x256xf32>
    %158 = vector.extract_strided_slice %88 {offsets = [1, 1, 0, 0], sizes = [1, 1, 8, 8], strides = [1, 1, 1, 1]} : vector<4x4x8x8xbf16> to vector<1x1x8x8xbf16>
    %159 = vector.shape_cast %158 : vector<1x1x8x8xbf16> to vector<8x8xbf16>
    %cst_42 = arith.constant dense<0.000000e+00> : vector<8x256xf32>
    %160 = tpu.matmul %159, %110, %cst_42 {dimension_numbers = #tpu.dot_dimension_numbers<[1], [0], [0], [1], [0, 0, 1, 1], [], []>} : vector<8x8xbf16>, vector<8x256xbf16>, vector<8x256xf32> -> vector<8x256xf32>
    %161 = arith.addf %157, %160 : vector<8x256xf32>
    %162 = vector.extract_strided_slice %88 {offsets = [1, 2, 0, 0], sizes = [1, 1, 8, 8], strides = [1, 1, 1, 1]} : vector<4x4x8x8xbf16> to vector<1x1x8x8xbf16>
    %163 = vector.shape_cast %162 : vector<1x1x8x8xbf16> to vector<8x8xbf16>
    %cst_43 = arith.constant dense<0.000000e+00> : vector<8x256xf32>
    %164 = tpu.matmul %163, %115, %cst_43 {dimension_numbers = #tpu.dot_dimension_numbers<[1], [0], [0], [1], [0, 0, 1, 1], [], []>} : vector<8x8xbf16>, vector<8x256xbf16>, vector<8x256xf32> -> vector<8x256xf32>
    %165 = arith.addf %161, %164 : vector<8x256xf32>
    %166 = vector.extract_strided_slice %88 {offsets = [1, 3, 0, 0], sizes = [1, 1, 8, 8], strides = [1, 1, 1, 1]} : vector<4x4x8x8xbf16> to vector<1x1x8x8xbf16>
    %167 = vector.shape_cast %166 : vector<1x1x8x8xbf16> to vector<8x8xbf16>
    %cst_44 = arith.constant dense<0.000000e+00> : vector<8x256xf32>
    %168 = tpu.matmul %167, %119, %cst_44 {dimension_numbers = #tpu.dot_dimension_numbers<[1], [0], [0], [1], [0, 0, 1, 1], [], []>} : vector<8x8xbf16>, vector<8x256xbf16>, vector<8x256xf32> -> vector<8x256xf32>
    %169 = arith.addf %165, %168 : vector<8x256xf32>
    %170 = vector.broadcast %89 : vector<8x1xf32> to vector<8x256xf32>
    %171 = arith.addf %169, %170 : vector<8x256xf32>
    %cst_45 = arith.constant 0.000000e+00 : f32
    %172 = vector.broadcast %cst_45 : f32 to vector<8x256xf32>
    %173 = arith.maximumf %171, %172 : vector<8x256xf32>
    %174 = vector.extract_strided_slice %88 {offsets = [2, 0, 0, 0], sizes = [1, 1, 8, 8], strides = [1, 1, 1, 1]} : vector<4x4x8x8xbf16> to vector<1x1x8x8xbf16>
    %175 = vector.shape_cast %174 : vector<1x1x8x8xbf16> to vector<8x8xbf16>
    %cst_46 = arith.constant dense<0.000000e+00> : vector<8x256xf32>
    %176 = tpu.matmul %175, %114, %cst_46 {dimension_numbers = #tpu.dot_dimension_numbers<[1], [0], [0], [1], [0, 0, 1, 1], [], []>} : vector<8x8xbf16>, vector<8x256xbf16>, vector<8x256xf32> -> vector<8x256xf32>
    %177 = vector.extract_strided_slice %88 {offsets = [2, 1, 0, 0], sizes = [1, 1, 8, 8], strides = [1, 1, 1, 1]} : vector<4x4x8x8xbf16> to vector<1x1x8x8xbf16>
    %178 = vector.shape_cast %177 : vector<1x1x8x8xbf16> to vector<8x8xbf16>
    %cst_47 = arith.constant dense<0.000000e+00> : vector<8x256xf32>
    %179 = tpu.matmul %178, %115, %cst_47 {dimension_numbers = #tpu.dot_dimension_numbers<[1], [0], [0], [1], [0, 0, 1, 1], [], []>} : vector<8x8xbf16>, vector<8x256xbf16>, vector<8x256xf32> -> vector<8x256xf32>
    %180 = arith.addf %176, %179 : vector<8x256xf32>
    %181 = vector.extract_strided_slice %88 {offsets = [2, 2, 0, 0], sizes = [1, 1, 8, 8], strides = [1, 1, 1, 1]} : vector<4x4x8x8xbf16> to vector<1x1x8x8xbf16>
    %182 = vector.shape_cast %181 : vector<1x1x8x8xbf16> to vector<8x8xbf16>
    %cst_48 = arith.constant dense<0.000000e+00> : vector<8x256xf32>
    %183 = tpu.matmul %182, %125, %cst_48 {dimension_numbers = #tpu.dot_dimension_numbers<[1], [0], [0], [1], [0, 0, 1, 1], [], []>} : vector<8x8xbf16>, vector<8x256xbf16>, vector<8x256xf32> -> vector<8x256xf32>
    %184 = arith.addf %180, %183 : vector<8x256xf32>
    %185 = vector.extract_strided_slice %88 {offsets = [2, 3, 0, 0], sizes = [1, 1, 8, 8], strides = [1, 1, 1, 1]} : vector<4x4x8x8xbf16> to vector<1x1x8x8xbf16>
    %186 = vector.shape_cast %185 : vector<1x1x8x8xbf16> to vector<8x8xbf16>
    %cst_49 = arith.constant dense<0.000000e+00> : vector<8x256xf32>
    %187 = tpu.matmul %186, %129, %cst_49 {dimension_numbers = #tpu.dot_dimension_numbers<[1], [0], [0], [1], [0, 0, 1, 1], [], []>} : vector<8x8xbf16>, vector<8x256xbf16>, vector<8x256xf32> -> vector<8x256xf32>
    %188 = arith.addf %184, %187 : vector<8x256xf32>
    %189 = vector.broadcast %89 : vector<8x1xf32> to vector<8x256xf32>
    %190 = arith.addf %188, %189 : vector<8x256xf32>
    %cst_50 = arith.constant 0.000000e+00 : f32
    %191 = vector.broadcast %cst_50 : f32 to vector<8x256xf32>
    %192 = arith.maximumf %190, %191 : vector<8x256xf32>
    %193 = vector.extract_strided_slice %88 {offsets = [3, 0, 0, 0], sizes = [1, 1, 8, 8], strides = [1, 1, 1, 1]} : vector<4x4x8x8xbf16> to vector<1x1x8x8xbf16>
    %194 = vector.shape_cast %193 : vector<1x1x8x8xbf16> to vector<8x8xbf16>
    %cst_51 = arith.constant dense<0.000000e+00> : vector<8x256xf32>
    %195 = tpu.matmul %194, %115, %cst_51 {dimension_numbers = #tpu.dot_dimension_numbers<[1], [0], [0], [1], [0, 0, 1, 1], [], []>} : vector<8x8xbf16>, vector<8x256xbf16>, vector<8x256xf32> -> vector<8x256xf32>
    %196 = vector.extract_strided_slice %88 {offsets = [3, 1, 0, 0], sizes = [1, 1, 8, 8], strides = [1, 1, 1, 1]} : vector<4x4x8x8xbf16> to vector<1x1x8x8xbf16>
    %197 = vector.shape_cast %196 : vector<1x1x8x8xbf16> to vector<8x8xbf16>
    %cst_52 = arith.constant dense<0.000000e+00> : vector<8x256xf32>
    %198 = tpu.matmul %197, %119, %cst_52 {dimension_numbers = #tpu.dot_dimension_numbers<[1], [0], [0], [1], [0, 0, 1, 1], [], []>} : vector<8x8xbf16>, vector<8x256xbf16>, vector<8x256xf32> -> vector<8x256xf32>
    %199 = arith.addf %195, %198 : vector<8x256xf32>
    %200 = vector.extract_strided_slice %88 {offsets = [3, 2, 0, 0], sizes = [1, 1, 8, 8], strides = [1, 1, 1, 1]} : vector<4x4x8x8xbf16> to vector<1x1x8x8xbf16>
    %201 = vector.shape_cast %200 : vector<1x1x8x8xbf16> to vector<8x8xbf16>
    %cst_53 = arith.constant dense<0.000000e+00> : vector<8x256xf32>
    %202 = tpu.matmul %201, %129, %cst_53 {dimension_numbers = #tpu.dot_dimension_numbers<[1], [0], [0], [1], [0, 0, 1, 1], [], []>} : vector<8x8xbf16>, vector<8x256xbf16>, vector<8x256xf32> -> vector<8x256xf32>
    %203 = arith.addf %199, %202 : vector<8x256xf32>
    %204 = vector.extract_strided_slice %88 {offsets = [3, 3, 0, 0], sizes = [1, 1, 8, 8], strides = [1, 1, 1, 1]} : vector<4x4x8x8xbf16> to vector<1x1x8x8xbf16>
    %205 = vector.shape_cast %204 : vector<1x1x8x8xbf16> to vector<8x8xbf16>
    %cst_54 = arith.constant dense<0.000000e+00> : vector<8x256xf32>
    %206 = tpu.matmul %205, %135, %cst_54 {dimension_numbers = #tpu.dot_dimension_numbers<[1], [0], [0], [1], [0, 0, 1, 1], [], []>} : vector<8x8xbf16>, vector<8x256xbf16>, vector<8x256xf32> -> vector<8x256xf32>
    %207 = arith.addf %203, %206 : vector<8x256xf32>
    %208 = vector.broadcast %89 : vector<8x1xf32> to vector<8x256xf32>
    %209 = arith.addf %207, %208 : vector<8x256xf32>
    %cst_55 = arith.constant 0.000000e+00 : f32
    %210 = vector.broadcast %cst_55 : f32 to vector<8x256xf32>
    %211 = arith.maximumf %209, %210 : vector<8x256xf32>
    %212 = arith.truncf %154 : vector<8x256xf32> to vector<8x256xbf16>
    %cst_56 = arith.constant dense<0.000000e+00> : vector<3x256xf32>
    %213 = tpu.matmul %0, %212, %cst_56 {dimension_numbers = #tpu.dot_dimension_numbers<[1], [0], [0], [1], [0, 0, 1, 1], [], []>} : vector<3x8xbf16>, vector<8x256xbf16>, vector<3x256xf32> -> vector<3x256xf32>
    %214 = vector.broadcast %1 : vector<3x1xf32> to vector<3x256xf32>
    %215 = arith.addf %213, %214 : vector<3x256xf32>
    %c0_57 = arith.constant 0 : index
    %c0_58 = arith.constant 0 : index
    %c0_59 = arith.constant 0 : index
    %c0_60 = arith.constant 0 : index
    %216 = vector.load %arg8[%c0_57, %c0_58, %c0_59, %c0_60] : memref<1x4x3x256xf32, #tpu.memory_space<vmem>>, vector<1x1x3x256xf32>
    %217 = vector.shape_cast %216 : vector<1x1x3x256xf32> to vector<3x256xf32>
    %218 = vector.shape_cast %215 : vector<3x256xf32> to vector<1x1x3x256xf32>
    tpu.vector_store %arg8[%c0_57, %c0_58, %c0_59, %c0_60], %218 {strides = array<i32>} : memref<1x4x3x256xf32, #tpu.memory_space<vmem>>, vector<1x1x3x256xf32>,
    %219 = arith.truncf %173 : vector<8x256xf32> to vector<8x256xbf16>
    %cst_61 = arith.constant dense<0.000000e+00> : vector<3x256xf32>
    %220 = tpu.matmul %0, %219, %cst_61 {dimension_numbers = #tpu.dot_dimension_numbers<[1], [0], [0], [1], [0, 0, 1, 1], [], []>} : vector<3x8xbf16>, vector<8x256xbf16>, vector<3x256xf32> -> vector<3x256xf32>
    %221 = vector.broadcast %1 : vector<3x1xf32> to vector<3x256xf32>
    %222 = arith.addf %220, %221 : vector<3x256xf32>
    %c0_62 = arith.constant 0 : index
    %c1 = arith.constant 1 : index
    %c0_63 = arith.constant 0 : index
    %c0_64 = arith.constant 0 : index
    %223 = vector.load %arg8[%c0_62, %c1, %c0_63, %c0_64] : memref<1x4x3x256xf32, #tpu.memory_space<vmem>>, vector<1x1x3x256xf32>
    %224 = vector.shape_cast %223 : vector<1x1x3x256xf32> to vector<3x256xf32>
    %225 = vector.shape_cast %222 : vector<3x256xf32> to vector<1x1x3x256xf32>
    tpu.vector_store %arg8[%c0_62, %c1, %c0_63, %c0_64], %225 {strides = array<i32>} : memref<1x4x3x256xf32, #tpu.memory_space<vmem>>, vector<1x1x3x256xf32>,
    %226 = arith.truncf %192 : vector<8x256xf32> to vector<8x256xbf16>
    %cst_65 = arith.constant dense<0.000000e+00> : vector<3x256xf32>
    %227 = tpu.matmul %0, %226, %cst_65 {dimension_numbers = #tpu.dot_dimension_numbers<[1], [0], [0], [1], [0, 0, 1, 1], [], []>} : vector<3x8xbf16>, vector<8x256xbf16>, vector<3x256xf32> -> vector<3x256xf32>
    %228 = vector.broadcast %1 : vector<3x1xf32> to vector<3x256xf32>
    %229 = arith.addf %227, %228 : vector<3x256xf32>
    %c0_66 = arith.constant 0 : index
    %c2 = arith.constant 2 : index
    %c0_67 = arith.constant 0 : index
    %c0_68 = arith.constant 0 : index
    %230 = vector.load %arg8[%c0_66, %c2, %c0_67, %c0_68] : memref<1x4x3x256xf32, #tpu.memory_space<vmem>>, vector<1x1x3x256xf32>
    %231 = vector.shape_cast %230 : vector<1x1x3x256xf32> to vector<3x256xf32>
    %232 = vector.shape_cast %229 : vector<3x256xf32> to vector<1x1x3x256xf32>
    tpu.vector_store %arg8[%c0_66, %c2, %c0_67, %c0_68], %232 {strides = array<i32>} : memref<1x4x3x256xf32, #tpu.memory_space<vmem>>, vector<1x1x3x256xf32>,
    %233 = arith.truncf %211 : vector<8x256xf32> to vector<8x256xbf16>
    %cst_69 = arith.constant dense<0.000000e+00> : vector<3x256xf32>
    %234 = tpu.matmul %0, %233, %cst_69 {dimension_numbers = #tpu.dot_dimension_numbers<[1], [0], [0], [1], [0, 0, 1, 1], [], []>} : vector<3x8xbf16>, vector<8x256xbf16>, vector<3x256xf32> -> vector<3x256xf32>
    %235 = vector.broadcast %1 : vector<3x1xf32> to vector<3x256xf32>
    %236 = arith.addf %234, %235 : vector<3x256xf32>
    %c0_70 = arith.constant 0 : index
    %c3 = arith.constant 3 : index
    %c0_71 = arith.constant 0 : index
    %c0_72 = arith.constant 0 : index
    %237 = vector.load %arg8[%c0_70, %c3, %c0_71, %c0_72] : memref<1x4x3x256xf32, #tpu.memory_space<vmem>>, vector<1x1x3x256xf32>
    %238 = vector.shape_cast %237 : vector<1x1x3x256xf32> to vector<3x256xf32>
    %239 = vector.shape_cast %236 : vector<3x256xf32> to vector<1x1x3x256xf32>
    tpu.vector_store %arg8[%c0_70, %c3, %c0_71, %c0_72], %239 {strides = array<i32>} : memref<1x4x3x256xf32, #tpu.memory_space<vmem>>, vector<1x1x3x256xf32>,
    %240 = arith.addf %154, %173 : vector<8x256xf32>
    %241 = arith.addf %240, %192 : vector<8x256xf32>
    %242 = arith.addf %241, %211 : vector<8x256xf32>
    %cst_73 = arith.constant 2.500000e-01 : f32
    %243 = vector.broadcast %cst_73 : f32 to vector<8x256xf32>
    %244 = arith.mulf %242, %243 : vector<8x256xf32>
    %c0_74 = arith.constant 0 : index
    %c0_75 = arith.constant 0 : index
    %c0_76 = arith.constant 0 : index
    %245 = vector.load %arg9[%c0_74, %c0_75, %c0_76] : memref<1x8x256xf32, #tpu.memory_space<vmem>>, vector<1x8x256xf32>
    %246 = vector.shape_cast %245 : vector<1x8x256xf32> to vector<8x256xf32>
    %247 = vector.shape_cast %244 : vector<8x256xf32> to vector<1x8x256xf32>
    tpu.vector_store %arg9[%c0_74, %c0_75, %c0_76], %247 {strides = array<i32>} : memref<1x8x256xf32, #tpu.memory_space<vmem>>, vector<1x8x256xf32>,
    return
  }
  func.func @transform_0(%arg0: i32) -> (i32, i32, i32) {
    %c0_i32 = arith.constant 0 : i32
    %c0_i32_0 = arith.constant 0 : i32
    %c0_i32_1 = arith.constant 0 : i32
    return %arg0, %c0_i32, %c0_i32_0 : i32, i32, i32
  }
  func.func @transform_1(%arg0: i32) -> (i32, i32) {
    %c0_i32 = arith.constant 0 : i32
    %c0_i32_0 = arith.constant 0 : i32
    %c0_i32_1 = arith.constant 0 : i32
    return %c0_i32, %c0_i32_0 : i32, i32
  }
  func.func @transform_2(%arg0: i32) -> (i32, i32, i32) {
    %c0_i32 = arith.constant 0 : i32
    %c0_i32_0 = arith.constant 0 : i32
    %c0_i32_1 = arith.constant 0 : i32
    %c0_i32_2 = arith.constant 0 : i32
    return %c0_i32, %c0_i32_0, %c0_i32_1 : i32, i32, i32
  }
  func.func @transform_3(%arg0: i32) -> (i32, i32, i32, i32) {
    %c0_i32 = arith.constant 0 : i32
    %c0_i32_0 = arith.constant 0 : i32
    %c0_i32_1 = arith.constant 0 : i32
    %c0_i32_2 = arith.constant 0 : i32
    %c0_i32_3 = arith.constant 0 : i32
    return %c0_i32, %c0_i32_0, %c0_i32_1, %c0_i32_2 : i32, i32, i32, i32
  }
  func.func @transform_4(%arg0: i32) -> (i32, i32) {
    %c0_i32 = arith.constant 0 : i32
    %c0_i32_0 = arith.constant 0 : i32
    %c0_i32_1 = arith.constant 0 : i32
    return %c0_i32, %c0_i32_0 : i32, i32
  }
  func.func @transform_5(%arg0: i32) -> (i32, i32) {
    %c0_i32 = arith.constant 0 : i32
    %c0_i32_0 = arith.constant 0 : i32
    %c0_i32_1 = arith.constant 0 : i32
    return %c0_i32, %c0_i32_0 : i32, i32
  }
  func.func @transform_6(%arg0: i32) -> (i32, i32) {
    %c0_i32 = arith.constant 0 : i32
    %c0_i32_0 = arith.constant 0 : i32
    %c0_i32_1 = arith.constant 0 : i32
    return %c0_i32, %c0_i32_0 : i32, i32
  }
  func.func @transform_7(%arg0: i32) -> (i32, i32, i32, i32) {
    %c0_i32 = arith.constant 0 : i32
    %c0_i32_0 = arith.constant 0 : i32
    %c0_i32_1 = arith.constant 0 : i32
    %c0_i32_2 = arith.constant 0 : i32
    return %arg0, %c0_i32, %c0_i32_0, %c0_i32_1 : i32, i32, i32, i32
  }
  func.func @transform_8(%arg0: i32) -> (i32, i32, i32) {
    %c0_i32 = arith.constant 0 : i32
    %c0_i32_0 = arith.constant 0 : i32
    %c0_i32_1 = arith.constant 0 : i32
    return %arg0, %c0_i32, %c0_i32_0 : i32, i32, i32
  }
}

</mosaic_0001>

<llo_original>
// kernel: map_seg_head_forward.1
$region0: #{map_seg_head_forward.1}
  #allocation0 [shape = 'u32[]', space=smem, size = 0x4, offset = 0x4, fixed_abs, tag = 'smem constant byte address 0x4 - core index']
  #allocation1 [shape = 'u32[144,128]{1,0:T(1,128)}', space=vmem, size = 0x12000, scoped, tag = 'internal scratch']
  %s0 = inlined_call_operand.vmem [shape: f32[2,4,256], index: 0, kind: input, shape index: {}]
  %s1 = inlined_call_operand.hbm [shape: f32[4,256], index: 1, kind: input, shape index: {}]
  %s2 = inlined_call_operand.vmem [shape: bf16[9,8,4], index: 2, kind: input, shape index: {}]
  %s3 = inlined_call_operand.vmem [shape: bf16[4,4,8,8], index: 3, kind: input, shape index: {}]
  %s4 = inlined_call_operand.vmem [shape: f32[8,1], index: 4, kind: input, shape index: {}]
  %s5 = inlined_call_operand.vmem [shape: bf16[3,8], index: 5, kind: input, shape index: {}]
  %s6 = inlined_call_operand.vmem [shape: f32[3,1], index: 6, kind: input, shape index: {}]
  %s7 = inlined_call_operand.vmem [shape: f32[2,4,3,256], index: 7, kind: output, shape index: {0}]
  %s8 = inlined_call_operand.vmem [shape: f32[2,8,256], index: 8, kind: output, shape index: {1}]
  %9 = xla_tuple %s7, %s8
  %s10 = sld [smem:[#allocation0]]
  $region73: #{map_seg_head_forward.1} parent=0
    _
  %s12 = ssub.s32 1, %s10
  %s13 = scalar_select 0, %s12, %s10
  $region1: #{map_seg_head_forward.1} parent=0
    #allocation2 [shape = 'u8[4096]{0}', space=vmem, size = 0x1000, scoped, tag = 'input window, operand 1, single buffered']
    #allocation3 [shape = 's32[2]{0}', space=sflag, size = 0x8, scoped, tag = 'scoped memory for map_seg_head_forward.1']
    %14 = vsyncpa [#allocation3], 0
    loop: start=0, step=1, limit=4
    $region2: #{map_seg_head_forward.1} parent=1 // loop_pre_header
      _
    $region3: #{map_seg_head_forward.1} parent=1 // loop_header
      %s16 = sphi 0, %s20
      %p17 = scmp.ge.s32.totalorder %s16, 4
      %s26 = sphi 0, %s28
      %s29 = sphi 0, %s26
      %s30 = sphi 0, %s29
      %s46 = sphi 0, %s30
      %s50 = sphi 0, %s50
      %s52 = sphi 0, %s50
      %s53 = sphi 0, %s52
      %s67 = sphi 0, %s53
      %s71 = sphi 0, %s71
      %s73 = sphi 0, %s71
      %s74 = sphi 0, %s73
      %s88 = sphi 0, %s74
      %s92 = sphi 0, %s92
      %s94 = sphi 0, %s92
      %s95 = sphi 0, %s94
      %s109 = sphi 0, %s95
      %s113 = sphi 0, %s113
      %s115 = sphi 0, %s113
      %s116 = sphi 0, %s115
      %s130 = sphi 0, %s116
      %s134 = sphi 0, %s134
      %s136 = sphi 0, %s134
      %s137 = sphi 0, %s136
      %s151 = sphi 0, %s137
      %s155 = sphi 0, %s155
      %s157 = sphi 0, %s155
      %s158 = sphi 0, %s157
      %s172 = sphi 0, %s158
      %s178 = sphi 0, %s180
      %s181 = sphi 0, %s178
      %s182 = sphi 0, %s181
      %s198 = sphi 0, %s182
      %s204 = sphi 0, %s206
      %s207 = sphi 0, %s204
      %s208 = sphi 0, %s207
      %s224 = sphi 0, %s208
    $region4: #{map_seg_head_forward.1} parent=1 // loop_header_branch
      %19 = sbr.rel (%p17) target = $region8
    $region5: #{map_seg_head_forward.1} parent=1 // loop_body
      %s21 = ssub.s32 %s16, 1
      %s22 = ssub.s32 %s16, 2
      %s23 = sadd.s32 %s16, 1
      %s24 = ssub.s32 %s16, %s23
      %p25 = scmp.eq.s32.totalorder %s24, 0
      %s27 = sadd.s32 %s26, 1
      %s28 = scalar_select %p25, %s26, %s27
      %p31 = pneg %p25
      %p32 = scmp.eq.s32.totalorder %s16, 1
      %p33 = por %p31, %p32
      %p34 = scmp.ne.s32.totalorder %s26, %s29
      %p35 = scmp.eq.s32.totalorder %s16, 0
      %p36 = por %p34, %p35
      %p37 = scmp.ne.s32.totalorder %s26, %s29
      %p38 = scmp.eq.s32.totalorder %s21, 1
      %p39 = por %p37, %p38
      %p40 = scmp.ne.s32.totalorder %s29, %s30
      %p41 = scmp.eq.s32.totalorder %s21, 0
      %p42 = por %p40, %p41
      %p43 = scmp.ne.s32.totalorder %s29, %s30
      %p44 = scmp.eq.s32.totalorder %s22, 1
      %p45 = por %p43, %p44
      %p47 = scmp.ne.s32.totalorder %s30, %s46
      %p48 = scmp.eq.s32.totalorder %s22, 0
      %p49 = por %p47, %p48
      %s51 = sadd.s32 %s50, 1
      %p54 = scmp.eq.s32.totalorder %s16, 1
      %p55 = scmp.ne.s32.totalorder %s50, %s52
      %p56 = scmp.eq.s32.totalorder %s16, 0
      %p57 = por %p55, %p56
      %p58 = scmp.ne.s32.totalorder %s50, %s52
      %p59 = scmp.eq.s32.totalorder %s21, 1
      %p60 = por %p58, %p59
      %p61 = scmp.ne.s32.totalorder %s52, %s53
      %p62 = scmp.eq.s32.totalorder %s21, 0
      %p63 = por %p61, %p62
      %p64 = scmp.ne.s32.totalorder %s52, %s53
      %p65 = scmp.eq.s32.totalorder %s22, 1
      %p66 = por %p64, %p65
      %p68 = scmp.ne.s32.totalorder %s53, %s67
      %p69 = scmp.eq.s32.totalorder %s22, 0
      %p70 = por %p68, %p69
      %s72 = sadd.s32 %s71, 1
      %p75 = scmp.eq.s32.totalorder %s16, 1
      %p76 = scmp.ne.s32.totalorder %s71, %s73
      %p77 = scmp.eq.s32.totalorder %s16, 0
      %p78 = por %p76, %p77
      %p79 = scmp.ne.s32.totalorder %s71, %s73
      %p80 = scmp.eq.s32.totalorder %s21, 1
      %p81 = por %p79, %p80
      %p82 = scmp.ne.s32.totalorder %s73, %s74
      %p83 = scmp.eq.s32.totalorder %s21, 0
      %p84 = por %p82, %p83
      %p85 = scmp.ne.s32.totalorder %s73, %s74
      %p86 = scmp.eq.s32.totalorder %s22, 1
      %p87 = por %p85, %p86
      %p89 = scmp.ne.s32.totalorder %s74, %s88
      %p90 = scmp.eq.s32.totalorder %s22, 0
      %p91 = por %p89, %p90
      %s93 = sadd.s32 %s92, 1
      %p96 = scmp.eq.s32.totalorder %s16, 1
      %p97 = scmp.ne.s32.totalorder %s92, %s94
      %p98 = scmp.eq.s32.totalorder %s16, 0
      %p99 = por %p97, %p98
      %p100 = scmp.ne.s32.totalorder %s92, %s94
      %p101 = scmp.eq.s32.totalorder %s21, 1
      %p102 = por %p100, %p101
      %p103 = scmp.ne.s32.totalorder %s94, %s95
      %p104 = scmp.eq.s32.totalorder %s21, 0
      %p105 = por %p103, %p104
      %p106 = scmp.ne.s32.totalorder %s94, %s95
      %p107 = scmp.eq.s32.totalorder %s22, 1
      %p108 = por %p106, %p107
      %p110 = scmp.ne.s32.totalorder %s95, %s109
      %p111 = scmp.eq.s32.totalorder %s22, 0
      %p112 = por %p110, %p111
      %s114 = sadd.s32 %s113, 1
      %p117 = scmp.eq.s32.totalorder %s16, 1
      %p118 = scmp.ne.s32.totalorder %s113, %s115
      %p119 = scmp.eq.s32.totalorder %s16, 0
      %p120 = por %p118, %p119
      %p121 = scmp.ne.s32.totalorder %s113, %s115
      %p122 = scmp.eq.s32.totalorder %s21, 1
      %p123 = por %p121, %p122
      %p124 = scmp.ne.s32.totalorder %s115, %s116
      %p125 = scmp.eq.s32.totalorder %s21, 0
      %p126 = por %p124, %p125
      %p127 = scmp.ne.s32.totalorder %s115, %s116
      %p128 = scmp.eq.s32.totalorder %s22, 1
      %p129 = por %p127, %p128
      %p131 = scmp.ne.s32.totalorder %s116, %s130
      %p132 = scmp.eq.s32.totalorder %s22, 0
      %p133 = por %p131, %p132
      %s135 = sadd.s32 %s134, 1
      %p138 = scmp.eq.s32.totalorder %s16, 1
      %p139 = scmp.ne.s32.totalorder %s134, %s136
      %p140 = scmp.eq.s32.totalorder %s16, 0
      %p141 = por %p139, %p140
      %p142 = scmp.ne.s32.totalorder %s134, %s136
      %p143 = scmp.eq.s32.totalorder %s21, 1
      %p144 = por %p142, %p143
      %p145 = scmp.ne.s32.totalorder %s136, %s137
      %p146 = scmp.eq.s32.totalorder %s21, 0
      %p147 = por %p145, %p146
      %p148 = scmp.ne.s32.totalorder %s136, %s137
      %p149 = scmp.eq.s32.totalorder %s22, 1
      %p150 = por %p148, %p149
      %p152 = scmp.ne.s32.totalorder %s137, %s151
      %p153 = scmp.eq.s32.totalorder %s22, 0
      %p154 = por %p152, %p153
      %s156 = sadd.s32 %s155, 1
      %p159 = scmp.eq.s32.totalorder %s16, 1
      %p160 = scmp.ne.s32.totalorder %s155, %s157
      %p161 = scmp.eq.s32.totalorder %s16, 0
      %p162 = por %p160, %p161
      %p163 = scmp.ne.s32.totalorder %s155, %s157
      %p164 = scmp.eq.s32.totalorder %s21, 1
      %p165 = por %p163, %p164
      %p166 = scmp.ne.s32.totalorder %s157, %s158
      %p167 = scmp.eq.s32.totalorder %s21, 0
      %p168 = por %p166, %p167
      %p169 = scmp.ne.s32.totalorder %s157, %s158
      %p170 = scmp.eq.s32.totalorder %s22, 1
      %p171 = por %p169, %p170
      %p173 = scmp.ne.s32.totalorder %s158, %s172
      %p174 = scmp.eq.s32.totalorder %s22, 0
      %p175 = por %p173, %p174
      %s176 = ssub.s32 %s16, %s23
      %p177 = scmp.eq.s32.totalorder %s176, 0
      %s179 = sadd.s32 %s178, 1
      %s180 = scalar_select %p177, %s178, %s179
      %p183 = pneg %p177
      %p184 = scmp.eq.s32.totalorder %s16, 1
      %p185 = por %p183, %p184
      %p186 = scmp.ne.s32.totalorder %s178, %s181
      %p187 = scmp.eq.s32.totalorder %s16, 0
      %p188 = por %p186, %p187
      %p189 = scmp.ne.s32.totalorder %s178, %s181
      %p190 = scmp.eq.s32.totalorder %s21, 1
      %p191 = por %p189, %p190
      %p192 = scmp.ne.s32.totalorder %s181, %s182
      %p193 = scmp.eq.s32.totalorder %s21, 0
      %p194 = por %p192, %p193
      %p195 = scmp.ne.s32.totalorder %s181, %s182
      %p196 = scmp.eq.s32.totalorder %s22, 1
      %p197 = por %p195, %p196
      %p199 = scmp.ne.s32.totalorder %s182, %s198
      %p200 = scmp.eq.s32.totalorder %s22, 0
      %p201 = por %p199, %p200
      %s202 = ssub.s32 %s16, %s23
      %p203 = scmp.eq.s32.totalorder %s202, 0
      %s205 = sadd.s32 %s204, 1
      %s206 = scalar_select %p203, %s204, %s205
      %p209 = pneg %p203
      %p210 = scmp.eq.s32.totalorder %s16, 1
      %p211 = por %p209, %p210
      %p212 = scmp.ne.s32.totalorder %s204, %s207
      %p213 = scmp.eq.s32.totalorder %s16, 0
      %p214 = por %p212, %p213
      %p215 = scmp.ne.s32.totalorder %s204, %s207
      %p216 = scmp.eq.s32.totalorder %s21, 1
      %p217 = por %p215, %p216
      %p218 = scmp.ne.s32.totalorder %s207, %s208
      %p219 = scmp.eq.s32.totalorder %s21, 0
      %p220 = por %p218, %p219
      %p221 = scmp.ne.s32.totalorder %s207, %s208
      %p222 = scmp.eq.s32.totalorder %s22, 1
      %p223 = por %p221, %p222
      %p225 = scmp.ne.s32.totalorder %s208, %s224
      %p226 = scmp.eq.s32.totalorder %s22, 0
      %p227 = por %p225, %p226
      %p228 = scmp.le.s32.totalorder 1, %s16
      %p229 = scmp.lt.s32.totalorder %s16, 3
      %p230 = pnand %p228, %p229
      %p231 = pneg %p230
      // Predicated region
      $region9: #{map_seg_head_forward.1} parent=5 // pred_check
        _
      $region10: #{map_seg_head_forward.1} parent=5 // pred_check_branch
        %233 = sbr.rel (%p230) target = $region12
      $region11: #{map_seg_head_forward.1} parent=5 // pred_region
        %s234 = ssub.s32 %s16, 1
        // Predicated region
        $region13: #{map_seg_head_forward.1} parent=11 // pred_check
          %p235 = pneg %p63
        $region14: #{map_seg_head_forward.1} parent=11 // pred_check_branch
          %237 = sbr.rel (%p235) target = $region16
        $region15: #{map_seg_head_forward.1} parent=11 // pred_region
          %s239 = ssub.s32 128, 128
          %240 = vsyncadd [#allocation3], %s239
          %s242 = sshll.u32 [#allocation2], 4
          %s243 = int_to_ptr.vmem [resolvable:$true] %s242
          %245 = dma.hbm_to_vmem [thread:$0]  %s1, 128, %s243, [#allocation3]
        $region16: #{map_seg_head_forward.1} parent=11 // pred_fallthru
          _
        // Predicated region
        $region17: #{map_seg_head_forward.1} parent=11 // pred_check
          %p246 = pneg %p84
        $region18: #{map_seg_head_forward.1} parent=11 // pred_check_branch
          %248 = sbr.rel (%p246) target = $region20
        $region19: #{map_seg_head_forward.1} parent=11 // pred_region
          _
        $region20: #{map_seg_head_forward.1} parent=11 // pred_fallthru
          _
        // Predicated region
        $region21: #{map_seg_head_forward.1} parent=11 // pred_check
          %p249 = pneg %p105
        $region22: #{map_seg_head_forward.1} parent=11 // pred_check_branch
          %251 = sbr.rel (%p249) target = $region24
        $region23: #{map_seg_head_forward.1} parent=11 // pred_region
          _
        $region24: #{map_seg_head_forward.1} parent=11 // pred_fallthru
          _
        // Predicated region
        $region25: #{map_seg_head_forward.1} parent=11 // pred_check
          %p252 = pneg %p126
        $region26: #{map_seg_head_forward.1} parent=11 // pred_check_branch
          %254 = sbr.rel (%p252) target = $region28
        $region27: #{map_seg_head_forward.1} parent=11 // pred_region
          _
        $region28: #{map_seg_head_forward.1} parent=11 // pred_fallthru
          _
        // Predicated region
        $region29: #{map_seg_head_forward.1} parent=11 // pred_check
          %p255 = pneg %p147
        $region30: #{map_seg_head_forward.1} parent=11 // pred_check_branch
          %257 = sbr.rel (%p255) target = $region32
        $region31: #{map_seg_head_forward.1} parent=11 // pred_region
          _
        $region32: #{map_seg_head_forward.1} parent=11 // pred_fallthru
          _
        // Predicated region
        $region33: #{map_seg_head_forward.1} parent=11 // pred_check
          %p258 = pneg %p168
        $region34: #{map_seg_head_forward.1} parent=11 // pred_check_branch
          %260 = sbr.rel (%p258) target = $region36
        $region35: #{map_seg_head_forward.1} parent=11 // pred_region
          _
        $region36: #{map_seg_head_forward.1} parent=11 // pred_fallthru
          _
      $region12: #{map_seg_head_forward.1} parent=5 // pred_fallthru
        _
      %p261 = scmp.lt.s32.totalorder %s16, 2
      // Predicated region
      $region37: #{map_seg_head_forward.1} parent=5 // pred_check
        %p262 = pneg %p261
      $region38: #{map_seg_head_forward.1} parent=5 // pred_check_branch
        %264 = sbr.rel (%p262) target = $region40
      $region39: #{map_seg_head_forward.1} parent=5 // pred_region
        // Predicated region
        $region41: #{map_seg_head_forward.1} parent=39 // pred_check
          %p265 = pneg %p36
        $region42: #{map_seg_head_forward.1} parent=39 // pred_check_branch
          %267 = sbr.rel (%p265) target = $region44
        $region43: #{map_seg_head_forward.1} parent=39 // pred_region
          %p268 = scmp.lt.s32.totalorder %s16, 1
          %s269 = scalar_select %p268, %s16, 1
          %s270 = smul.addr %s269, 2
          %s271 = smul.addr %s270, 4
          %s272 = scalar_lea.vmem %s0, %s271
        $region44: #{map_seg_head_forward.1} parent=39 // pred_fallthru
          _
      $region40: #{map_seg_head_forward.1} parent=5 // pred_fallthru
        _
      %p273 = scmp.le.s32.totalorder 1, %s16
      %p274 = scmp.lt.s32.totalorder %s16, 3
      %p275 = pnand %p273, %p274
      %p276 = pneg %p275
      // Predicated region
      $region45: #{map_seg_head_forward.1} parent=5 // pred_check
        _
      $region46: #{map_seg_head_forward.1} parent=5 // pred_check_branch
        %278 = sbr.rel (%p275) target = $region48
      $region47: #{map_seg_head_forward.1} parent=5 // pred_region
        %s279 = ssub.s32 %s16, 1
        // Predicated region
        $region49: #{map_seg_head_forward.1} parent=47 // pred_check
          %p280 = pneg %p63
        $region50: #{map_seg_head_forward.1} parent=47 // pred_check_branch
          %282 = sbr.rel (%p280) target = $region52
        $region51: #{map_seg_head_forward.1} parent=47 // pred_region
          %283 = dma.done [#allocation3], 128
        $region52: #{map_seg_head_forward.1} parent=47 // pred_fallthru
          _
        %p284 = scmp.lt.s32.totalorder %s21, 1
        %s285 = scalar_select %p284, %s21, 1
        %s286 = smul.addr %s285, 2
        %s287 = smul.addr %s286, 4
        %s288 = scalar_lea.vmem %s0, %s287
        %p289 = pneg %p42
        %p290 = pneg %p39
        %p291 = pneg %p63
        %p292 = pneg %p60
        %p293 = pneg %p84
        %p294 = pneg %p81
        %p295 = pneg %p105
        %p296 = pneg %p102
        %p297 = pneg %p126
        %p298 = pneg %p123
        %p299 = pneg %p147
        %p300 = pneg %p144
        %p301 = pneg %p168
        %p302 = pneg %p165
        %p303 = pneg %p194
        %p304 = pneg %p191
        %p305 = scmp.lt.s32.totalorder %s21, 1
        %s306 = scalar_select %p305, %s21, 1
        %s307 = smul.addr %s306, 8
        %s308 = smul.addr %s307, 4
        %s309 = scalar_lea.vmem %s7, %s308
        %p310 = pneg %p220
        %p311 = pneg %p217
        %p312 = scmp.lt.s32.totalorder %s21, 1
        %s313 = scalar_select %p312, %s21, 1
        %s314 = smul.addr %s313, 2
        %s315 = smul.addr %s314, 8
        %s316 = scalar_lea.vmem %s8, %s315
        %p317 = scmp.lt.s32.totalorder %s21, 1
        %s318 = scalar_select %p317, %s21, 1
        %s319 = smul.addr %s318, 2
        %s320 = smul.addr %s319, 4
        %s321 = scalar_lea.vmem %s0, %s320
        %p322 = scmp.lt.s32.totalorder %s21, 1
        %s323 = scalar_select %p322, %s21, 1
        %s324 = smul.addr %s323, 8
        %s325 = smul.addr %s324, 4
        %s326 = scalar_lea.vmem %s7, %s325
        %p327 = scmp.lt.s32.totalorder %s21, 1
        %s328 = scalar_select %p327, %s21, 1
        %s329 = smul.addr %s328, 2
        %s330 = smul.addr %s329, 8
        %s331 = scalar_lea.vmem %s8, %s330
        %v333 = vld [vmem:[%s5] sm:$0x3]
        %v334 = vld [vmem:[%s6] sm:$0x7]
        %v335 = vld [vmem:[%s321] sm:$0xff]
        %v336 = vld [vmem:[%s2] sm:$0xf]
        %v337 = vld [vmem:[%s2 + $0x4] sm:$0xf]
        %v338 = vld [vmem:[%s2 + $0x8] sm:$0xf]
        %v339 = vld [vmem:[%s2 + $0xc] sm:$0xf]
        %v340 = vld [vmem:[%s2 + $0x10] sm:$0xf]
        %v341 = vld [vmem:[%s2 + $0x14] sm:$0xf]
        %v342 = vld [vmem:[%s2 + $0x18] sm:$0xf]
        %v343 = vld [vmem:[%s2 + $0x1c] sm:$0xf]
        %v344 = vld [vmem:[%s2 + $0x20] sm:$0xf]
        %v345 = vld [vmem:[#allocation2] sm:$0xff]
        %v347 = vcombine.high %v335, %v335
        %349 = vrot.lane.b32.xlu0 %v335, 17
        %v350 = vpop.permute.xlu0 %349
        %351 = vrot.lane.b32.xlu0 %v347, 17
        %v352 = vpop.permute.xlu0 %351
        %v353 = vlaneseq
        %v354 = vand.u32 %v353, 127
        %vm355 = vcmp.lt.s32.totalorder %v354, 17
        %v356 = vsel %vm355, %v350, %v352
        %v357 = vsel %vm355, %v352, %v350
        %v359 = vlaneseq
        %v360 = vshrl.u32 %v359, 7
        %v361 = vsub.s32 0, %v360
        %v362 = vrot.slane %v345, %v361
        %v363 = vlaneseq
        %v364 = vshrl.u32 %v363, 7
        %v365 = vsub.s32 4, %v364
        %v366 = vrot.slane %v345, %v365
        %v369 = vlaneseq
        %v370 = vshrl.u32 %v369, 7
        %v371 = vsub.s32 0, %v370
        %v372 = vrot.slane %v362, %v371
        %v373 = vlaneseq
        %v374 = vshrl.u32 %v373, 7
        %v375 = vsub.s32 0, %v374
        %v376 = vrot.slane %v366, %v375
        %v377 = vmul.f32 %v357, %v372
        %v378 = vmul.f32 %v356, %v376
        %v379 = vlaneseq
        %v380 = vshrl.u32 %v379, 7
        %v381 = vsub.s32 2, %v380
        %v382 = vrot.slane %v345, %v381
        %v383 = vlaneseq
        %v384 = vshrl.u32 %v383, 7
        %v385 = vsub.s32 6, %v384
        %v386 = vrot.slane %v345, %v385
        %v389 = vlaneseq
        %v390 = vshrl.u32 %v389, 7
        %v391 = vsub.s32 2, %v390
        %v392 = vrot.slane %v382, %v391
        %v393 = vlaneseq
        %v394 = vshrl.u32 %v393, 7
        %v395 = vsub.s32 2, %v394
        %v396 = vrot.slane %v386, %v395
        %v397 = vmul.f32 %v377, %v392
        %v398 = vmul.f32 %v378, %v396
        %v399 = vpack.c.bf16 %v397, %v397
        %v400 = vpack.c.bf16 %v398, %v398
        %401 = vrot.lane.b32.xlu0 %v335, 16
        %v402 = vpop.permute.xlu0 %401
        %403 = vrot.lane.b32.xlu0 %v347, 16
        %v404 = vpop.permute.xlu0 %403
        %vm405 = vcmp.lt.s32.totalorder %v354, 16
        %v406 = vsel %vm405, %v402, %v404
        %v407 = vsel %vm405, %v404, %v402
        %v408 = vmul.f32 %v407, %v372
        %v409 = vmul.f32 %v406, %v376
        %v410 = vpack.c.bf16 %v408, %v408
        %v411 = vpack.c.bf16 %v409, %v409
        %412 = vrot.lane.b32.xlu0 %v335, 15
        %v413 = vpop.permute.xlu0 %412
        %414 = vrot.lane.b32.xlu0 %v347, 15
        %v415 = vpop.permute.xlu0 %414
        %vm416 = vcmp.lt.s32.totalorder %v354, 15
        %v417 = vsel %vm416, %v413, %v415
        %v418 = vsel %vm416, %v415, %v413
        %v419 = vmul.f32 %v418, %v372
        %v420 = vmul.f32 %v417, %v376
        %v421 = vlaneseq
        %v422 = vshrl.u32 %v421, 7
        %v423 = vsub.s32 3, %v422
        %v424 = vrot.slane %v345, %v423
        %v425 = vlaneseq
        %v426 = vshrl.u32 %v425, 7
        %v427 = vsub.s32 7, %v426
        %v428 = vrot.slane %v345, %v427
        %v431 = vlaneseq
        %v432 = vshrl.u32 %v431, 7
        %v433 = vsub.s32 3, %v432
        %v434 = vrot.slane %v424, %v433
        %v435 = vlaneseq
        %v436 = vshrl.u32 %v435, 7
        %v437 = vsub.s32 3, %v436
        %v438 = vrot.slane %v428, %v437
        %v439 = vmul.f32 %v419, %v434
        %v440 = vmul.f32 %v420, %v438
        %v441 = vpack.c.bf16 %v439, %v439
        %v442 = vpack.c.bf16 %v440, %v440
        %443 = vrot.lane.b32.xlu0 %v335, 1
        %v444 = vpop.permute.xlu0 %443
        %445 = vrot.lane.b32.xlu0 %v347, 1
        %v446 = vpop.permute.xlu0 %445
        %vm447 = vcmp.lt.s32.totalorder %v354, 1
        %v448 = vsel %vm447, %v444, %v446
        %v449 = vsel %vm447, %v446, %v444
        %v450 = vmul.f32 %v449, %v392
        %v451 = vmul.f32 %v448, %v396
        %v452 = vpack.c.bf16 %v450, %v450
        %v453 = vpack.c.bf16 %v451, %v451
        %v454 = vpack.c.bf16 %v335, %v335
        %v455 = vpack.c.bf16 %v347, %v347
        %456 = vrot.lane.b32.xlu0 %v335, 127
        %v457 = vpop.permute.xlu0 %456
        %458 = vrot.lane.b32.xlu0 %v347, 127
        %v459 = vpop.permute.xlu0 %458
        %vm460 = vcmp.lt.s32.totalorder %v354, 127
        %v461 = vsel %vm460, %v457, %v459
        %v462 = vsel %vm460, %v459, %v457
        %v463 = vmul.f32 %v461, %v434
        %v464 = vmul.f32 %v462, %v438
        %v465 = vpack.c.bf16 %v463, %v463
        %v466 = vpack.c.bf16 %v464, %v464
        %467 = vrot.lane.b32.xlu0 %v335, 113
        %v468 = vpop.permute.xlu0 %467
        %469 = vrot.lane.b32.xlu0 %v347, 113
        %v470 = vpop.permute.xlu0 %469
        %vm471 = vcmp.lt.s32.totalorder %v354, 113
        %v472 = vsel %vm471, %v468, %v470
        %v473 = vsel %vm471, %v470, %v468
        %v474 = vlaneseq
        %v475 = vshrl.u32 %v474, 7
        %v476 = vsub.s32 1, %v475
        %v477 = vrot.slane %v345, %v476
        %v478 = vlaneseq
        %v479 = vshrl.u32 %v478, 7
        %v480 = vsub.s32 5, %v479
        %v481 = vrot.slane %v345, %v480
        %v484 = vlaneseq
        %v485 = vshrl.u32 %v484, 7
        %v486 = vsub.s32 1, %v485
        %v487 = vrot.slane %v477, %v486
        %v488 = vlaneseq
        %v489 = vshrl.u32 %v488, 7
        %v490 = vsub.s32 1, %v489
        %v491 = vrot.slane %v481, %v490
        %v492 = vmul.f32 %v472, %v487
        %v493 = vmul.f32 %v473, %v491
        %v494 = vmul.f32 %v492, %v392
        %v495 = vmul.f32 %v493, %v396
        %v496 = vpack.c.bf16 %v494, %v494
        %v497 = vpack.c.bf16 %v495, %v495
        %498 = vrot.lane.b32.xlu0 %v335, 112
        %v499 = vpop.permute.xlu0 %498
        %500 = vrot.lane.b32.xlu0 %v347, 112
        %v501 = vpop.permute.xlu0 %500
        %vm502 = vcmp.lt.s32.totalorder %v354, 112
        %v503 = vsel %vm502, %v499, %v501
        %v504 = vsel %vm502, %v501, %v499
        %v505 = vmul.f32 %v503, %v487
        %v506 = vmul.f32 %v504, %v491
        %v507 = vpack.c.bf16 %v505, %v505
        %v508 = vpack.c.bf16 %v506, %v506
        %509 = vrot.lane.b32.xlu0 %v335, 111
        %v510 = vpop.permute.xlu0 %509
        %511 = vrot.lane.b32.xlu0 %v347, 111
        %v512 = vpop.permute.xlu0 %511
        %vm513 = vcmp.lt.s32.totalorder %v354, 111
        %v514 = vsel %vm513, %v510, %v512
        %v515 = vsel %vm513, %v512, %v510
        %v516 = vmul.f32 %v514, %v487
        %v517 = vmul.f32 %v515, %v491
        %v518 = vmul.f32 %v516, %v434
        %v519 = vmul.f32 %v517, %v438
        %v520 = vpack.c.bf16 %v518, %v518
        %v521 = vpack.c.bf16 %v519, %v519
        %vm522 = vcmask 31744
        %v524 = vsel %vm522, %v337, 0
        %vm526 = vcmask 1041408
        %v528 = vsel %vm526, %v410, 0
        %v531 = vsel %vm526, %v411, 0
        %533 = vmatprep.subr.bf16.mxu0 0
        %534 = vmatpush1.bf16.msra.mxu0 0
        %535 = vmatprep.subr.bf16.mxu0 0
        %536 = vmatpush1.bf16.msra.mxu0 0
        %537 = vmatprep.subr.bf16.mxu0 0
        %538 = vmatpush1.bf16.msra.mxu0 0
        %539 = vmatprep.subr.bf16.mxu0 0
        %540 = vmatpush1.bf16.msra.mxu0 0
        %541 = vmatprep.subr.bf16.mxu0 0
        %542 = vmatpush1.bf16.msra.mxu0 0
        %543 = vmatprep.subr.bf16.mxu0 0
        %544 = vmatpush1.bf16.msra.mxu0 0
        %545 = vmatprep.subr.bf16.mxu0 0
        %546 = vmatpush1.bf16.msra.mxu0 0
        %547 = vmatprep.subr.bf16.mxu0 %v531
        %548 = vmatpush1.bf16.msra.mxu0 %v528
        %549 = vmatprep.subr.bf16.mxu0 0
        %550 = vmatpush2.bf16.msra.mxu0 0
        %551 = vmatprep.subr.bf16.mxu0 0
        %552 = vmatpush2.bf16.msra.mxu0 0
        %553 = vmatprep.subr.bf16.mxu0 0
        %554 = vmatpush2.bf16.msra.mxu0 0
        %555 = vmatprep.subr.bf16.mxu0 0
        %556 = vmatpush2.bf16.msra.mxu0 0
        %557 = vmatprep.subr.bf16.mxu0 0
        %558 = vmatpush2.bf16.msra.mxu0 0
        %559 = vmatprep.subr.bf16.mxu0 0
        %560 = vmatpush2.bf16.msra.mxu0 0
        %561 = vmatprep.subr.bf16.mxu0 0
        %562 = vmatpush2.bf16.msra.mxu0 0
        %563 = vmatprep.subr.bf16.mxu0 0
        %564 = vmatpush2.bf16.msra.mxu0 0
        %565 = vmatprep.mubr.bf16.mxu0 0
        %566 = vmatmul.mubr.bf16.gmra.mxu0 %v524
        %v567 = vpop.f32.mrf.mxu0
        %v568 = vadd.f32 0.0, %v567
        %v569 = vpop.f32.mrf.mxu0
        %v570 = vadd.f32 0.0, %v569
        %v571 = vpop.f32.mrf.mxu0
        %v572 = vpop.f32.mrf.mxu0
        %573 = vdwg.mxu0
        %v575 = vsel %vm522, %v336, 0
        %v578 = vsel %vm526, %v399, 0
        %v581 = vsel %vm526, %v400, 0
        %583 = vmatprep.subr.bf16.mxu0 0
        %584 = vmatpush1.bf16.msra.mxu0 0
        %585 = vmatprep.subr.bf16.mxu0 0
        %586 = vmatpush1.bf16.msra.mxu0 0
        %587 = vmatprep.subr.bf16.mxu0 0
        %588 = vmatpush1.bf16.msra.mxu0 0
        %589 = vmatprep.subr.bf16.mxu0 0
        %590 = vmatpush1.bf16.msra.mxu0 0
        %591 = vmatprep.subr.bf16.mxu0 0
        %592 = vmatpush1.bf16.msra.mxu0 0
        %593 = vmatprep.subr.bf16.mxu0 0
        %594 = vmatpush1.bf16.msra.mxu0 0
        %595 = vmatprep.subr.bf16.mxu0 0
        %596 = vmatpush1.bf16.msra.mxu0 0
        %597 = vmatprep.subr.bf16.mxu0 %v581
        %598 = vmatpush1.bf16.msra.mxu0 %v578
        %599 = vmatprep.subr.bf16.mxu0 0
        %600 = vmatpush2.bf16.msra.mxu0 0
        %601 = vmatprep.subr.bf16.mxu0 0
        %602 = vmatpush2.bf16.msra.mxu0 0
        %603 = vmatprep.subr.bf16.mxu0 0
        %604 = vmatpush2.bf16.msra.mxu0 0
        %605 = vmatprep.subr.bf16.mxu0 0
        %606 = vmatpush2.bf16.msra.mxu0 0
        %607 = vmatprep.subr.bf16.mxu0 0
        %608 = vmatpush2.bf16.msra.mxu0 0
        %609 = vmatprep.subr.bf16.mxu0 0
        %610 = vmatpush2.bf16.msra.mxu0 0
        %611 = vmatprep.subr.bf16.mxu0 0
        %612 = vmatpush2.bf16.msra.mxu0 0
        %613 = vmatprep.subr.bf16.mxu0 0
        %614 = vmatpush2.bf16.msra.mxu0 0
        %615 = vmatprep.mubr.bf16.mxu0 0
        %616 = vmatmul.mubr.bf16.gmra.mxu0 %v575
        %v617 = vpop.f32.mrf.mxu0
        %v618 = vadd.f32 %v568, %v617
        %v619 = vpop.f32.mrf.mxu0
        %v620 = vadd.f32 %v570, %v619
        %v621 = vpop.f32.mrf.mxu0
        %v622 = vpop.f32.mrf.mxu0
        %623 = vdwg.mxu0
        %v625 = vsel %vm522, %v338, 0
        %v628 = vsel %vm526, %v441, 0
        %v631 = vsel %vm526, %v442, 0
        %633 = vmatprep.subr.bf16.mxu0 0
        %634 = vmatpush1.bf16.msra.mxu0 0
        %635 = vmatprep.subr.bf16.mxu0 0
        %636 = vmatpush1.bf16.msra.mxu0 0
        %637 = vmatprep.subr.bf16.mxu0 0
        %638 = vmatpush1.bf16.msra.mxu0 0
        %639 = vmatprep.subr.bf16.mxu0 0
        %640 = vmatpush1.bf16.msra.mxu0 0
        %641 = vmatprep.subr.bf16.mxu0 0
        %642 = vmatpush1.bf16.msra.mxu0 0
        %643 = vmatprep.subr.bf16.mxu0 0
        %644 = vmatpush1.bf16.msra.mxu0 0
        %645 = vmatprep.subr.bf16.mxu0 0
        %646 = vmatpush1.bf16.msra.mxu0 0
        %647 = vmatprep.subr.bf16.mxu0 %v631
        %648 = vmatpush1.bf16.msra.mxu0 %v628
        %649 = vmatprep.subr.bf16.mxu0 0
        %650 = vmatpush2.bf16.msra.mxu0 0
        %651 = vmatprep.subr.bf16.mxu0 0
        %652 = vmatpush2.bf16.msra.mxu0 0
        %653 = vmatprep.subr.bf16.mxu0 0
        %654 = vmatpush2.bf16.msra.mxu0 0
        %655 = vmatprep.subr.bf16.mxu0 0
        %656 = vmatpush2.bf16.msra.mxu0 0
        %657 = vmatprep.subr.bf16.mxu0 0
        %658 = vmatpush2.bf16.msra.mxu0 0
        %659 = vmatprep.subr.bf16.mxu0 0
        %660 = vmatpush2.bf16.msra.mxu0 0
        %661 = vmatprep.subr.bf16.mxu0 0
        %662 = vmatpush2.bf16.msra.mxu0 0
        %663 = vmatprep.subr.bf16.mxu0 0
        %664 = vmatpush2.bf16.msra.mxu0 0
        %665 = vmatprep.mubr.bf16.mxu0 0
        %666 = vmatmul.mubr.bf16.gmra.mxu0 %v625
        %v667 = vpop.f32.mrf.mxu0
        %v668 = vadd.f32 0.0, %v667
        %v669 = vpop.f32.mrf.mxu0
        %v670 = vadd.f32 0.0, %v669
        %v671 = vpop.f32.mrf.mxu0
        %v672 = vpop.f32.mrf.mxu0
        %673 = vdwg.mxu0
        %v674 = vadd.f32 %v618, %v668
        %v675 = vadd.f32 %v620, %v670
        %v677 = vsel %vm522, %v339, 0
        %v680 = vsel %vm526, %v452, 0
        %v683 = vsel %vm526, %v453, 0
        %685 = vmatprep.subr.bf16.mxu0 0
        %686 = vmatpush1.bf16.msra.mxu0 0
        %687 = vmatprep.subr.bf16.mxu0 0
        %688 = vmatpush1.bf16.msra.mxu0 0
        %689 = vmatprep.subr.bf16.mxu0 0
        %690 = vmatpush1.bf16.msra.mxu0 0
        %691 = vmatprep.subr.bf16.mxu0 0
        %692 = vmatpush1.bf16.msra.mxu0 0
        %693 = vmatprep.subr.bf16.mxu0 0
        %694 = vmatpush1.bf16.msra.mxu0 0
        %695 = vmatprep.subr.bf16.mxu0 0
        %696 = vmatpush1.bf16.msra.mxu0 0
        %697 = vmatprep.subr.bf16.mxu0 0
        %698 = vmatpush1.bf16.msra.mxu0 0
        %699 = vmatprep.subr.bf16.mxu0 %v683
        %700 = vmatpush1.bf16.msra.mxu0 %v680
        %701 = vmatprep.subr.bf16.mxu0 0
        %702 = vmatpush2.bf16.msra.mxu0 0
        %703 = vmatprep.subr.bf16.mxu0 0
        %704 = vmatpush2.bf16.msra.mxu0 0
        %705 = vmatprep.subr.bf16.mxu0 0
        %706 = vmatpush2.bf16.msra.mxu0 0
        %707 = vmatprep.subr.bf16.mxu0 0
        %708 = vmatpush2.bf16.msra.mxu0 0
        %709 = vmatprep.subr.bf16.mxu0 0
        %710 = vmatpush2.bf16.msra.mxu0 0
        %711 = vmatprep.subr.bf16.mxu0 0
        %712 = vmatpush2.bf16.msra.mxu0 0
        %713 = vmatprep.subr.bf16.mxu0 0
        %714 = vmatpush2.bf16.msra.mxu0 0
        %715 = vmatprep.subr.bf16.mxu0 0
        %716 = vmatpush2.bf16.msra.mxu0 0
        %717 = vmatprep.mubr.bf16.mxu0 0
        %718 = vmatmul.mubr.bf16.gmra.mxu0 %v677
        %v719 = vpop.f32.mrf.mxu0
        %v720 = vadd.f32 0.0, %v719
        %v721 = vpop.f32.mrf.mxu0
        %v722 = vadd.f32 0.0, %v721
        %v723 = vpop.f32.mrf.mxu0
        %v724 = vpop.f32.mrf.mxu0
        %725 = vdwg.mxu0
        %v726 = vadd.f32 %v674, %v720
        %v727 = vadd.f32 %v675, %v722
        %v729 = vsel %vm522, %v340, 0
        %v732 = vsel %vm526, %v454, 0
        %v735 = vsel %vm526, %v455, 0
        %737 = vmatprep.subr.bf16.mxu0 0
        %738 = vmatpush1.bf16.msra.mxu0 0
        %739 = vmatprep.subr.bf16.mxu0 0
        %740 = vmatpush1.bf16.msra.mxu0 0
        %741 = vmatprep.subr.bf16.mxu0 0
        %742 = vmatpush1.bf16.msra.mxu0 0
        %743 = vmatprep.subr.bf16.mxu0 0
        %744 = vmatpush1.bf16.msra.mxu0 0
        %745 = vmatprep.subr.bf16.mxu0 0
        %746 = vmatpush1.bf16.msra.mxu0 0
        %747 = vmatprep.subr.bf16.mxu0 0
        %748 = vmatpush1.bf16.msra.mxu0 0
        %749 = vmatprep.subr.bf16.mxu0 0
        %750 = vmatpush1.bf16.msra.mxu0 0
        %751 = vmatprep.subr.bf16.mxu0 %v735
        %752 = vmatpush1.bf16.msra.mxu0 %v732
        %753 = vmatprep.subr.bf16.mxu0 0
        %754 = vmatpush2.bf16.msra.mxu0 0
        %755 = vmatprep.subr.bf16.mxu0 0
        %756 = vmatpush2.bf16.msra.mxu0 0
        %757 = vmatprep.subr.bf16.mxu0 0
        %758 = vmatpush2.bf16.msra.mxu0 0
        %759 = vmatprep.subr.bf16.mxu0 0
        %760 = vmatpush2.bf16.msra.mxu0 0
        %761 = vmatprep.subr.bf16.mxu0 0
        %762 = vmatpush2.bf16.msra.mxu0 0
        %763 = vmatprep.subr.bf16.mxu0 0
        %764 = vmatpush2.bf16.msra.mxu0 0
        %765 = vmatprep.subr.bf16.mxu0 0
        %766 = vmatpush2.bf16.msra.mxu0 0
        %767 = vmatprep.subr.bf16.mxu0 0
        %768 = vmatpush2.bf16.msra.mxu0 0
        %769 = vmatprep.mubr.bf16.mxu0 0
        %770 = vmatmul.mubr.bf16.gmra.mxu0 %v729
        %v771 = vpop.f32.mrf.mxu0
        %v772 = vadd.f32 0.0, %v771
        %v773 = vpop.f32.mrf.mxu0
        %v774 = vadd.f32 0.0, %v773
        %v775 = vpop.f32.mrf.mxu0
        %v776 = vpop.f32.mrf.mxu0
        %777 = vdwg.mxu0
        %v778 = vadd.f32 %v726, %v772
        %v779 = vadd.f32 %v727, %v774
        %v781 = vsel %vm522, %v341, 0
        %v784 = vsel %vm526, %v465, 0
        %v787 = vsel %vm526, %v466, 0
        %789 = vmatprep.subr.bf16.mxu0 0
        %790 = vmatpush1.bf16.msra.mxu0 0
        %791 = vmatprep.subr.bf16.mxu0 0
        %792 = vmatpush1.bf16.msra.mxu0 0
        %793 = vmatprep.subr.bf16.mxu0 0
        %794 = vmatpush1.bf16.msra.mxu0 0
        %795 = vmatprep.subr.bf16.mxu0 0
        %796 = vmatpush1.bf16.msra.mxu0 0
        %797 = vmatprep.subr.bf16.mxu0 0
        %798 = vmatpush1.bf16.msra.mxu0 0
        %799 = vmatprep.subr.bf16.mxu0 0
        %800 = vmatpush1.bf16.msra.mxu0 0
        %801 = vmatprep.subr.bf16.mxu0 0
        %802 = vmatpush1.bf16.msra.mxu0 0
        %803 = vmatprep.subr.bf16.mxu0 %v787
        %804 = vmatpush1.bf16.msra.mxu0 %v784
        %805 = vmatprep.subr.bf16.mxu0 0
        %806 = vmatpush2.bf16.msra.mxu0 0
        %807 = vmatprep.subr.bf16.mxu0 0
        %808 = vmatpush2.bf16.msra.mxu0 0
        %809 = vmatprep.subr.bf16.mxu0 0
        %810 = vmatpush2.bf16.msra.mxu0 0
        %811 = vmatprep.subr.bf16.mxu0 0
        %812 = vmatpush2.bf16.msra.mxu0 0
        %813 = vmatprep.subr.bf16.mxu0 0
        %814 = vmatpush2.bf16.msra.mxu0 0
        %815 = vmatprep.subr.bf16.mxu0 0
        %816 = vmatpush2.bf16.msra.mxu0 0
        %817 = vmatprep.subr.bf16.mxu0 0
        %818 = vmatpush2.bf16.msra.mxu0 0
        %819 = vmatprep.subr.bf16.mxu0 0
        %820 = vmatpush2.bf16.msra.mxu0 0
        %821 = vmatprep.mubr.bf16.mxu0 0
        %822 = vmatmul.mubr.bf16.gmra.mxu0 %v781
        %v823 = vpop.f32.mrf.mxu0
        %v824 = vadd.f32 0.0, %v823
        %v825 = vpop.f32.mrf.mxu0
        %v826 = vadd.f32 0.0, %v825
        %v827 = vpop.f32.mrf.mxu0
        %v828 = vpop.f32.mrf.mxu0
        %829 = vdwg.mxu0
        %v830 = vadd.f32 %v778, %v824
        %v831 = vadd.f32 %v779, %v826
        %v833 = vsel %vm522, %v342, 0
        %v836 = vsel %vm526, %v496, 0
        %v839 = vsel %vm526, %v497, 0
        %841 = vmatprep.subr.bf16.mxu0 0
        %842 = vmatpush1.bf16.msra.mxu0 0
        %843 = vmatprep.subr.bf16.mxu0 0
        %844 = vmatpush1.bf16.msra.mxu0 0
        %845 = vmatprep.subr.bf16.mxu0 0
        %846 = vmatpush1.bf16.msra.mxu0 0
        %847 = vmatprep.subr.bf16.mxu0 0
        %848 = vmatpush1.bf16.msra.mxu0 0
        %849 = vmatprep.subr.bf16.mxu0 0
        %850 = vmatpush1.bf16.msra.mxu0 0
        %851 = vmatprep.subr.bf16.mxu0 0
        %852 = vmatpush1.bf16.msra.mxu0 0
        %853 = vmatprep.subr.bf16.mxu0 0
        %854 = vmatpush1.bf16.msra.mxu0 0
        %855 = vmatprep.subr.bf16.mxu0 %v839
        %856 = vmatpush1.bf16.msra.mxu0 %v836
        %857 = vmatprep.subr.bf16.mxu0 0
        %858 = vmatpush2.bf16.msra.mxu0 0
        %859 = vmatprep.subr.bf16.mxu0 0
        %860 = vmatpush2.bf16.msra.mxu0 0
        %861 = vmatprep.subr.bf16.mxu0 0
        %862 = vmatpush2.bf16.msra.mxu0 0
        %863 = vmatprep.subr.bf16.mxu0 0
        %864 = vmatpush2.bf16.msra.mxu0 0
        %865 = vmatprep.subr.bf16.mxu0 0
        %866 = vmatpush2.bf16.msra.mxu0 0
        %867 = vmatprep.subr.bf16.mxu0 0
        %868 = vmatpush2.bf16.msra.mxu0 0
        %869 = vmatprep.subr.bf16.mxu0 0
        %870 = vmatpush2.bf16.msra.mxu0 0
        %871 = vmatprep.subr.bf16.mxu0 0
        %872 = vmatpush2.bf16.msra.mxu0 0
        %873 = vmatprep.mubr.bf16.mxu0 0
        %874 = vmatmul.mubr.bf16.gmra.mxu0 %v833
        %v875 = vpop.f32.mrf.mxu0
        %v876 = vadd.f32 0.0, %v875
        %v877 = vpop.f32.mrf.mxu0
        %v878 = vadd.f32 0.0, %v877
        %v879 = vpop.f32.mrf.mxu0
        %v880 = vpop.f32.mrf.mxu0
        %881 = vdwg.mxu0
        %v882 = vadd.f32 %v830, %v876
        %v883 = vadd.f32 %v831, %v878
        %v885 = vsel %vm522, %v343, 0
        %v888 = vsel %vm526, %v507, 0
        %v891 = vsel %vm526, %v508, 0
        %893 = vmatprep.subr.bf16.mxu0 0
        %894 = vmatpush1.bf16.msra.mxu0 0
        %895 = vmatprep.subr.bf16.mxu0 0
        %896 = vmatpush1.bf16.msra.mxu0 0
        %897 = vmatprep.subr.bf16.mxu0 0
        %898 = vmatpush1.bf16.msra.mxu0 0
        %899 = vmatprep.subr.bf16.mxu0 0
        %900 = vmatpush1.bf16.msra.mxu0 0
        %901 = vmatprep.subr.bf16.mxu0 0
        %902 = vmatpush1.bf16.msra.mxu0 0
        %903 = vmatprep.subr.bf16.mxu0 0
        %904 = vmatpush1.bf16.msra.mxu0 0
        %905 = vmatprep.subr.bf16.mxu0 0
        %906 = vmatpush1.bf16.msra.mxu0 0
        %907 = vmatprep.subr.bf16.mxu0 %v891
        %908 = vmatpush1.bf16.msra.mxu0 %v888
        %909 = vmatprep.subr.bf16.mxu0 0
        %910 = vmatpush2.bf16.msra.mxu0 0
        %911 = vmatprep.subr.bf16.mxu0 0
        %912 = vmatpush2.bf16.msra.mxu0 0
        %913 = vmatprep.subr.bf16.mxu0 0
        %914 = vmatpush2.bf16.msra.mxu0 0
        %915 = vmatprep.subr.bf16.mxu0 0
        %916 = vmatpush2.bf16.msra.mxu0 0
        %917 = vmatprep.subr.bf16.mxu0 0
        %918 = vmatpush2.bf16.msra.mxu0 0
        %919 = vmatprep.subr.bf16.mxu0 0
        %920 = vmatpush2.bf16.msra.mxu0 0
        %921 = vmatprep.subr.bf16.mxu0 0
        %922 = vmatpush2.bf16.msra.mxu0 0
        %923 = vmatprep.subr.bf16.mxu0 0
        %924 = vmatpush2.bf16.msra.mxu0 0
        %925 = vmatprep.mubr.bf16.mxu0 0
        %926 = vmatmul.mubr.bf16.gmra.mxu0 %v885
        %v927 = vpop.f32.mrf.mxu0
        %v928 = vadd.f32 0.0, %v927
        %v929 = vpop.f32.mrf.mxu0
        %v930 = vadd.f32 0.0, %v929
        %v931 = vpop.f32.mrf.mxu0
        %v932 = vpop.f32.mrf.mxu0
        %933 = vdwg.mxu0
        %v934 = vadd.f32 %v882, %v928
        %v935 = vadd.f32 %v883, %v930
        %v937 = vsel %vm522, %v344, 0
        %v940 = vsel %vm526, %v520, 0
        %v943 = vsel %vm526, %v521, 0
        %945 = vmatprep.subr.bf16.mxu0 0
        %946 = vmatpush1.bf16.msra.mxu0 0
        %947 = vmatprep.subr.bf16.mxu0 0
        %948 = vmatpush1.bf16.msra.mxu0 0
        %949 = vmatprep.subr.bf16.mxu0 0
        %950 = vmatpush1.bf16.msra.mxu0 0
        %951 = vmatprep.subr.bf16.mxu0 0
        %952 = vmatpush1.bf16.msra.mxu0 0
        %953 = vmatprep.subr.bf16.mxu0 0
        %954 = vmatpush1.bf16.msra.mxu0 0
        %955 = vmatprep.subr.bf16.mxu0 0
        %956 = vmatpush1.bf16.msra.mxu0 0
        %957 = vmatprep.subr.bf16.mxu0 0
        %958 = vmatpush1.bf16.msra.mxu0 0
        %959 = vmatprep.subr.bf16.mxu0 %v943
        %960 = vmatpush1.bf16.msra.mxu0 %v940
        %961 = vmatprep.subr.bf16.mxu0 0
        %962 = vmatpush2.bf16.msra.mxu0 0
        %963 = vmatprep.subr.bf16.mxu0 0
        %964 = vmatpush2.bf16.msra.mxu0 0
        %965 = vmatprep.subr.bf16.mxu0 0
        %966 = vmatpush2.bf16.msra.mxu0 0
        %967 = vmatprep.subr.bf16.mxu0 0
        %968 = vmatpush2.bf16.msra.mxu0 0
        %969 = vmatprep.subr.bf16.mxu0 0
        %970 = vmatpush2.bf16.msra.mxu0 0
        %971 = vmatprep.subr.bf16.mxu0 0
        %972 = vmatpush2.bf16.msra.mxu0 0
        %973 = vmatprep.subr.bf16.mxu0 0
        %974 = vmatpush2.bf16.msra.mxu0 0
        %975 = vmatprep.subr.bf16.mxu0 0
        %976 = vmatpush2.bf16.msra.mxu0 0
        %977 = vmatprep.mubr.bf16.mxu0 0
        %978 = vmatmul.mubr.bf16.gmra.mxu0 %v937
        %v979 = vpop.f32.mrf.mxu0
        %v980 = vadd.f32 0.0, %v979
        %v981 = vpop.f32.mrf.mxu0
        %v982 = vadd.f32 0.0, %v981
        %v983 = vpop.f32.mrf.mxu0
        %v984 = vpop.f32.mrf.mxu0
        %985 = vdwg.mxu0
        %v986 = vadd.f32 %v934, %v980
        %v987 = vadd.f32 %v935, %v982
        %v988 = vmax.f32 %v986, 0.0
        %v989 = vmax.f32 %v987, 0.0
        %v990 = vld [vmem:[%s3] sm:$0xf]
        %v991 = vld [vmem:[%s3 + $0x4] sm:$0xf]
        %v992 = vld [vmem:[%s3 + $0x8] sm:$0xf]
        %v993 = vld [vmem:[%s3 + $0xc] sm:$0xf]
        %v994 = vld [vmem:[%s3 + $0x10] sm:$0xf]
        %v995 = vld [vmem:[%s3 + $0x14] sm:$0xf]
        %v996 = vld [vmem:[%s3 + $0x18] sm:$0xf]
        %v997 = vld [vmem:[%s3 + $0x1c] sm:$0xf]
        %v998 = vld [vmem:[%s3 + $0x20] sm:$0xf]
        %v999 = vld [vmem:[%s3 + $0x24] sm:$0xf]
        %v1000 = vld [vmem:[%s3 + $0x28] sm:$0xf]
        %v1001 = vld [vmem:[%s3 + $0x2c] sm:$0xf]
        %v1002 = vld [vmem:[%s3 + $0x30] sm:$0xf]
        %v1003 = vld [vmem:[%s3 + $0x34] sm:$0xf]
        %v1004 = vld [vmem:[%s3 + $0x38] sm:$0xf]
        %v1005 = vld [vmem:[%s3 + $0x3c] sm:$0xf]
        %v1006 = vld [vmem:[%s4] sm:$0xff]
        %1007 = vrot.lane.b32.xlu0 %v988, 17
        %v1008 = vpop.permute.xlu0 %1007
        %1009 = vrot.lane.b32.xlu0 %v989, 17
        %v1010 = vpop.permute.xlu0 %1009
        %v1011 = vsel %vm355, %v1008, %v1010
        %v1012 = vsel %vm355, %v1010, %v1008
        %v1013 = vmul.f32 %v1012, %v372
        %v1014 = vmul.f32 %v1011, %v376
        %v1015 = vmul.f32 %v1013, %v392
        %v1016 = vmul.f32 %v1014, %v396
        %v1017 = vpack.c.bf16 %v1015, %v1015
        %v1018 = vpack.c.bf16 %v1016, %v1016
        %1019 = vrot.lane.b32.xlu0 %v988, 16
        %v1020 = vpop.permute.xlu0 %1019
        %1021 = vrot.lane.b32.xlu0 %v989, 16
        %v1022 = vpop.permute.xlu0 %1021
        %v1023 = vsel %vm405, %v1020, %v1022
        %v1024 = vsel %vm405, %v1022, %v1020
        %v1025 = vmul.f32 %v1024, %v372
        %v1026 = vmul.f32 %v1023, %v376
        %v1027 = vpack.c.bf16 %v1025, %v1025
        %v1028 = vpack.c.bf16 %v1026, %v1026
        %1029 = vrot.lane.b32.xlu0 %v988, 15
        %v1030 = vpop.permute.xlu0 %1029
        %1031 = vrot.lane.b32.xlu0 %v989, 15
        %v1032 = vpop.permute.xlu0 %1031
        %v1033 = vsel %vm416, %v1030, %v1032
        %v1034 = vsel %vm416, %v1032, %v1030
        %v1035 = vmul.f32 %v1034, %v372
        %v1036 = vmul.f32 %v1033, %v376
        %v1037 = vmul.f32 %v1035, %v434
        %v1038 = vmul.f32 %v1036, %v438
        %v1039 = vpack.c.bf16 %v1037, %v1037
        %v1040 = vpack.c.bf16 %v1038, %v1038
        %1041 = vrot.lane.b32.xlu0 %v988, 1
        %v1042 = vpop.permute.xlu0 %1041
        %1043 = vrot.lane.b32.xlu0 %v989, 1
        %v1044 = vpop.permute.xlu0 %1043
        %v1045 = vsel %vm447, %v1042, %v1044
        %v1046 = vsel %vm447, %v1044, %v1042
        %v1047 = vmul.f32 %v1046, %v392
        %v1048 = vmul.f32 %v1045, %v396
        %v1049 = vpack.c.bf16 %v1047, %v1047
        %v1050 = vpack.c.bf16 %v1048, %v1048
        %v1051 = vpack.c.bf16 %v988, %v988
        %v1052 = vpack.c.bf16 %v989, %v989
        %1053 = vrot.lane.b32.xlu0 %v988, 127
        %v1054 = vpop.permute.xlu0 %1053
        %1055 = vrot.lane.b32.xlu0 %v989, 127
        %v1056 = vpop.permute.xlu0 %1055
        %v1057 = vsel %vm460, %v1054, %v1056
        %v1058 = vsel %vm460, %v1056, %v1054
        %v1059 = vmul.f32 %v1057, %v434
        %v1060 = vmul.f32 %v1058, %v438
        %v1061 = vpack.c.bf16 %v1059, %v1059
        %v1062 = vpack.c.bf16 %v1060, %v1060
        %1063 = vrot.lane.b32.xlu0 %v988, 113
        %v1064 = vpop.permute.xlu0 %1063
        %1065 = vrot.lane.b32.xlu0 %v989, 113
        %v1066 = vpop.permute.xlu0 %1065
        %v1067 = vsel %vm471, %v1064, %v1066
        %v1068 = vsel %vm471, %v1066, %v1064
        %v1069 = vmul.f32 %v1067, %v487
        %v1070 = vmul.f32 %v1068, %v491
        %v1071 = vmul.f32 %v1069, %v392
        %v1072 = vmul.f32 %v1070, %v396
        %v1073 = vpack.c.bf16 %v1071, %v1071
        %v1074 = vpack.c.bf16 %v1072, %v1072
        %1075 = vrot.lane.b32.xlu0 %v988, 112
        %v1076 = vpop.permute.xlu0 %1075
        %1077 = vrot.lane.b32.xlu0 %v989, 112
        %v1078 = vpop.permute.xlu0 %1077
        %v1079 = vsel %vm502, %v1076, %v1078
        %v1080 = vsel %vm502, %v1078, %v1076
        %v1081 = vmul.f32 %v1079, %v487
        %v1082 = vmul.f32 %v1080, %v491
        %v1083 = vpack.c.bf16 %v1081, %v1081
        %v1084 = vpack.c.bf16 %v1082, %v1082
        %1085 = vrot.lane.b32.xlu0 %v988, 111
        %v1086 = vpop.permute.xlu0 %1085
        %1087 = vrot.lane.b32.xlu0 %v989, 111
        %v1088 = vpop.permute.xlu0 %1087
        %v1089 = vsel %vm513, %v1086, %v1088
        %v1090 = vsel %vm513, %v1088, %v1086
        %v1091 = vmul.f32 %v1089, %v487
        %v1092 = vmul.f32 %v1090, %v491
        %v1093 = vmul.f32 %v1091, %v434
        %v1094 = vmul.f32 %v1092, %v438
        %v1095 = vpack.c.bf16 %v1093, %v1093
        %v1096 = vpack.c.bf16 %v1094, %v1094
        %vm1097 = vcmask 64512
        %v1099 = vsel %vm1097, %v991, 0
        %vm1101 = vcmask 1043456
        %v1103 = vsel %vm1101, %v1027, 0
        %v1106 = vsel %vm1101, %v1028, 0
        %1108 = vmatprep.subr.bf16.mxu0 0
        %1109 = vmatpush1.bf16.msra.mxu0 0
        %1110 = vmatprep.subr.bf16.mxu0 0
        %1111 = vmatpush1.bf16.msra.mxu0 0
        %1112 = vmatprep.subr.bf16.mxu0 0
        %1113 = vmatpush1.bf16.msra.mxu0 0
        %1114 = vmatprep.subr.bf16.mxu0 0
        %1115 = vmatpush1.bf16.msra.mxu0 0
        %1116 = vmatprep.subr.bf16.mxu0 0
        %1117 = vmatpush1.bf16.msra.mxu0 0
        %1118 = vmatprep.subr.bf16.mxu0 0
        %1119 = vmatpush1.bf16.msra.mxu0 0
        %1120 = vmatprep.subr.bf16.mxu0 0
        %1121 = vmatpush1.bf16.msra.mxu0 0
        %1122 = vmatprep.subr.bf16.mxu0 %v1106
        %1123 = vmatpush1.bf16.msra.mxu0 %v1103
        %1124 = vmatprep.subr.bf16.mxu0 0
        %1125 = vmatpush2.bf16.msra.mxu0 0
        %1126 = vmatprep.subr.bf16.mxu0 0
        %1127 = vmatpush2.bf16.msra.mxu0 0
        %1128 = vmatprep.subr.bf16.mxu0 0
        %1129 = vmatpush2.bf16.msra.mxu0 0
        %1130 = vmatprep.subr.bf16.mxu0 0
        %1131 = vmatpush2.bf16.msra.mxu0 0
        %1132 = vmatprep.subr.bf16.mxu0 0
        %1133 = vmatpush2.bf16.msra.mxu0 0
        %1134 = vmatprep.subr.bf16.mxu0 0
        %1135 = vmatpush2.bf16.msra.mxu0 0
        %1136 = vmatprep.subr.bf16.mxu0 0
        %1137 = vmatpush2.bf16.msra.mxu0 0
        %1138 = vmatprep.subr.bf16.mxu0 0
        %1139 = vmatpush2.bf16.msra.mxu0 0
        %1140 = vmatprep.mubr.bf16.mxu0 0
        %1141 = vmatmul.mubr.bf16.gmra.mxu0 %v1099
        %v1142 = vpop.f32.mrf.mxu0
        %v1143 = vadd.f32 0.0, %v1142
        %v1144 = vpop.f32.mrf.mxu0
        %v1145 = vadd.f32 0.0, %v1144
        %v1146 = vpop.f32.mrf.mxu0
        %v1147 = vpop.f32.mrf.mxu0
        %1148 = vdwg.mxu0
        %v1150 = vsel %vm1097, %v990, 0
        %v1153 = vsel %vm1101, %v1017, 0
        %v1156 = vsel %vm1101, %v1018, 0
        %1158 = vmatprep.subr.bf16.mxu0 0
        %1159 = vmatpush1.bf16.msra.mxu0 0
        %1160 = vmatprep.subr.bf16.mxu0 0
        %1161 = vmatpush1.bf16.msra.mxu0 0
        %1162 = vmatprep.subr.bf16.mxu0 0
        %1163 = vmatpush1.bf16.msra.mxu0 0
        %1164 = vmatprep.subr.bf16.mxu0 0
        %1165 = vmatpush1.bf16.msra.mxu0 0
        %1166 = vmatprep.subr.bf16.mxu0 0
        %1167 = vmatpush1.bf16.msra.mxu0 0
        %1168 = vmatprep.subr.bf16.mxu0 0
        %1169 = vmatpush1.bf16.msra.mxu0 0
        %1170 = vmatprep.subr.bf16.mxu0 0
        %1171 = vmatpush1.bf16.msra.mxu0 0
        %1172 = vmatprep.subr.bf16.mxu0 %v1156
        %1173 = vmatpush1.bf16.msra.mxu0 %v1153
        %1174 = vmatprep.subr.bf16.mxu0 0
        %1175 = vmatpush2.bf16.msra.mxu0 0
        %1176 = vmatprep.subr.bf16.mxu0 0
        %1177 = vmatpush2.bf16.msra.mxu0 0
        %1178 = vmatprep.subr.bf16.mxu0 0
        %1179 = vmatpush2.bf16.msra.mxu0 0
        %1180 = vmatprep.subr.bf16.mxu0 0
        %1181 = vmatpush2.bf16.msra.mxu0 0
        %1182 = vmatprep.subr.bf16.mxu0 0
        %1183 = vmatpush2.bf16.msra.mxu0 0
        %1184 = vmatprep.subr.bf16.mxu0 0
        %1185 = vmatpush2.bf16.msra.mxu0 0
        %1186 = vmatprep.subr.bf16.mxu0 0
        %1187 = vmatpush2.bf16.msra.mxu0 0
        %1188 = vmatprep.subr.bf16.mxu0 0
        %1189 = vmatpush2.bf16.msra.mxu0 0
        %1190 = vmatprep.mubr.bf16.mxu0 0
        %1191 = vmatmul.mubr.bf16.gmra.mxu0 %v1150
        %v1192 = vpop.f32.mrf.mxu0
        %v1193 = vadd.f32 %v1143, %v1192
        %v1194 = vpop.f32.mrf.mxu0
        %v1195 = vadd.f32 %v1145, %v1194
        %v1196 = vpop.f32.mrf.mxu0
        %v1197 = vpop.f32.mrf.mxu0
        %1198 = vdwg.mxu0
        %v1200 = vsel %vm1097, %v992, 0
        %v1203 = vsel %vm1101, %v1049, 0
        %v1206 = vsel %vm1101, %v1050, 0
        %1208 = vmatprep.subr.bf16.mxu0 0
        %1209 = vmatpush1.bf16.msra.mxu0 0
        %1210 = vmatprep.subr.bf16.mxu0 0
        %1211 = vmatpush1.bf16.msra.mxu0 0
        %1212 = vmatprep.subr.bf16.mxu0 0
        %1213 = vmatpush1.bf16.msra.mxu0 0
        %1214 = vmatprep.subr.bf16.mxu0 0
        %1215 = vmatpush1.bf16.msra.mxu0 0
        %1216 = vmatprep.subr.bf16.mxu0 0
        %1217 = vmatpush1.bf16.msra.mxu0 0
        %1218 = vmatprep.subr.bf16.mxu0 0
        %1219 = vmatpush1.bf16.msra.mxu0 0
        %1220 = vmatprep.subr.bf16.mxu0 0
        %1221 = vmatpush1.bf16.msra.mxu0 0
        %1222 = vmatprep.subr.bf16.mxu0 %v1206
        %1223 = vmatpush1.bf16.msra.mxu0 %v1203
        %1224 = vmatprep.subr.bf16.mxu0 0
        %1225 = vmatpush2.bf16.msra.mxu0 0
        %1226 = vmatprep.subr.bf16.mxu0 0
        %1227 = vmatpush2.bf16.msra.mxu0 0
        %1228 = vmatprep.subr.bf16.mxu0 0
        %1229 = vmatpush2.bf16.msra.mxu0 0
        %1230 = vmatprep.subr.bf16.mxu0 0
        %1231 = vmatpush2.bf16.msra.mxu0 0
        %1232 = vmatprep.subr.bf16.mxu0 0
        %1233 = vmatpush2.bf16.msra.mxu0 0
        %1234 = vmatprep.subr.bf16.mxu0 0
        %1235 = vmatpush2.bf16.msra.mxu0 0
        %1236 = vmatprep.subr.bf16.mxu0 0
        %1237 = vmatpush2.bf16.msra.mxu0 0
        %1238 = vmatprep.subr.bf16.mxu0 0
        %1239 = vmatpush2.bf16.msra.mxu0 0
        %1240 = vmatprep.mubr.bf16.mxu0 0
        %1241 = vmatmul.mubr.bf16.gmra.mxu0 %v1200
        %v1242 = vpop.f32.mrf.mxu0
        %v1243 = vadd.f32 0.0, %v1242
        %v1244 = vpop.f32.mrf.mxu0
        %v1245 = vadd.f32 0.0, %v1244
        %v1246 = vpop.f32.mrf.mxu0
        %v1247 = vpop.f32.mrf.mxu0
        %1248 = vdwg.mxu0
        %v1249 = vadd.f32 %v1193, %v1243
        %v1250 = vadd.f32 %v1195, %v1245
        %v1252 = vsel %vm1097, %v993, 0
        %v1255 = vsel %vm1101, %v1051, 0
        %v1258 = vsel %vm1101, %v1052, 0
        %1260 = vmatprep.subr.bf16.mxu0 0
        %1261 = vmatpush1.bf16.msra.mxu0 0
        %1262 = vmatprep.subr.bf16.mxu0 0
        %1263 = vmatpush1.bf16.msra.mxu0 0
        %1264 = vmatprep.subr.bf16.mxu0 0
        %1265 = vmatpush1.bf16.msra.mxu0 0
        %1266 = vmatprep.subr.bf16.mxu0 0
        %1267 = vmatpush1.bf16.msra.mxu0 0
        %1268 = vmatprep.subr.bf16.mxu0 0
        %1269 = vmatpush1.bf16.msra.mxu0 0
        %1270 = vmatprep.subr.bf16.mxu0 0
        %1271 = vmatpush1.bf16.msra.mxu0 0
        %1272 = vmatprep.subr.bf16.mxu0 0
        %1273 = vmatpush1.bf16.msra.mxu0 0
        %1274 = vmatprep.subr.bf16.mxu0 %v1258
        %1275 = vmatpush1.bf16.msra.mxu0 %v1255
        %1276 = vmatprep.subr.bf16.mxu0 0
        %1277 = vmatpush2.bf16.msra.mxu0 0
        %1278 = vmatprep.subr.bf16.mxu0 0
        %1279 = vmatpush2.bf16.msra.mxu0 0
        %1280 = vmatprep.subr.bf16.mxu0 0
        %1281 = vmatpush2.bf16.msra.mxu0 0
        %1282 = vmatprep.subr.bf16.mxu0 0
        %1283 = vmatpush2.bf16.msra.mxu0 0
        %1284 = vmatprep.subr.bf16.mxu0 0
        %1285 = vmatpush2.bf16.msra.mxu0 0
        %1286 = vmatprep.subr.bf16.mxu0 0
        %1287 = vmatpush2.bf16.msra.mxu0 0
        %1288 = vmatprep.subr.bf16.mxu0 0
        %1289 = vmatpush2.bf16.msra.mxu0 0
        %1290 = vmatprep.subr.bf16.mxu0 0
        %1291 = vmatpush2.bf16.msra.mxu0 0
        %1292 = vmatprep.mubr.bf16.mxu0 0
        %1293 = vmatmul.mubr.bf16.gmra.mxu0 %v1252
        %v1294 = vpop.f32.mrf.mxu0
        %v1295 = vadd.f32 0.0, %v1294
        %v1296 = vpop.f32.mrf.mxu0
        %v1297 = vadd.f32 0.0, %v1296
        %v1298 = vpop.f32.mrf.mxu0
        %v1299 = vpop.f32.mrf.mxu0
        %1300 = vdwg.mxu0
        %v1301 = vadd.f32 %v1249, %v1295
        %v1302 = vadd.f32 %v1250, %v1297
        %1304 = vset.pattern.permute.xlu0 0
        %1305 = vperm.xlu0 %1304, %v1006
        %v1306 = vpop.permute.xlu0 %1305
        %v1308 = vadd.f32 %v1301, %v1306
        %v1309 = vadd.f32 %v1302, %v1306
        %v1310 = vmax.f32 %v1308, 0.0
        %v1311 = vmax.f32 %v1309, 0.0
        %v1313 = vsel %vm1097, %v995, 0
        %v1316 = vsel %vm1101, %v1039, 0
        %v1319 = vsel %vm1101, %v1040, 0
        %1321 = vmatprep.subr.bf16.mxu0 0
        %1322 = vmatpush1.bf16.msra.mxu0 0
        %1323 = vmatprep.subr.bf16.mxu0 0
        %1324 = vmatpush1.bf16.msra.mxu0 0
        %1325 = vmatprep.subr.bf16.mxu0 0
        %1326 = vmatpush1.bf16.msra.mxu0 0
        %1327 = vmatprep.subr.bf16.mxu0 0
        %1328 = vmatpush1.bf16.msra.mxu0 0
        %1329 = vmatprep.subr.bf16.mxu0 0
        %1330 = vmatpush1.bf16.msra.mxu0 0
        %1331 = vmatprep.subr.bf16.mxu0 0
        %1332 = vmatpush1.bf16.msra.mxu0 0
        %1333 = vmatprep.subr.bf16.mxu0 0
        %1334 = vmatpush1.bf16.msra.mxu0 0
        %1335 = vmatprep.subr.bf16.mxu0 %v1319
        %1336 = vmatpush1.bf16.msra.mxu0 %v1316
        %1337 = vmatprep.subr.bf16.mxu0 0
        %1338 = vmatpush2.bf16.msra.mxu0 0
        %1339 = vmatprep.subr.bf16.mxu0 0
        %1340 = vmatpush2.bf16.msra.mxu0 0
        %1341 = vmatprep.subr.bf16.mxu0 0
        %1342 = vmatpush2.bf16.msra.mxu0 0
        %1343 = vmatprep.subr.bf16.mxu0 0
        %1344 = vmatpush2.bf16.msra.mxu0 0
        %1345 = vmatprep.subr.bf16.mxu0 0
        %1346 = vmatpush2.bf16.msra.mxu0 0
        %1347 = vmatprep.subr.bf16.mxu0 0
        %1348 = vmatpush2.bf16.msra.mxu0 0
        %1349 = vmatprep.subr.bf16.mxu0 0
        %1350 = vmatpush2.bf16.msra.mxu0 0
        %1351 = vmatprep.subr.bf16.mxu0 0
        %1352 = vmatpush2.bf16.msra.mxu0 0
        %1353 = vmatprep.mubr.bf16.mxu0 0
        %1354 = vmatmul.mubr.bf16.gmra.mxu0 %v1313
        %v1355 = vpop.f32.mrf.mxu0
        %v1356 = vadd.f32 0.0, %v1355
        %v1357 = vpop.f32.mrf.mxu0
        %v1358 = vadd.f32 0.0, %v1357
        %v1359 = vpop.f32.mrf.mxu0
        %v1360 = vpop.f32.mrf.mxu0
        %1361 = vdwg.mxu0
        %v1363 = vsel %vm1097, %v994, 0
        %1365 = vmatprep.subr.bf16.mxu0 0
        %1366 = vmatpush1.bf16.msra.mxu0 0
        %1367 = vmatprep.subr.bf16.mxu0 0
        %1368 = vmatpush1.bf16.msra.mxu0 0
        %1369 = vmatprep.subr.bf16.mxu0 0
        %1370 = vmatpush1.bf16.msra.mxu0 0
        %1371 = vmatprep.subr.bf16.mxu0 0
        %1372 = vmatpush1.bf16.msra.mxu0 0
        %1373 = vmatprep.subr.bf16.mxu0 0
        %1374 = vmatpush1.bf16.msra.mxu0 0
        %1375 = vmatprep.subr.bf16.mxu0 0
        %1376 = vmatpush1.bf16.msra.mxu0 0
        %1377 = vmatprep.subr.bf16.mxu0 0
        %1378 = vmatpush1.bf16.msra.mxu0 0
        %1379 = vmatprep.subr.bf16.mxu0 %v1106
        %1380 = vmatpush1.bf16.msra.mxu0 %v1103
        %1381 = vmatprep.subr.bf16.mxu0 0
        %1382 = vmatpush2.bf16.msra.mxu0 0
        %1383 = vmatprep.subr.bf16.mxu0 0
        %1384 = vmatpush2.bf16.msra.mxu0 0
        %1385 = vmatprep.subr.bf16.mxu0 0
        %1386 = vmatpush2.bf16.msra.mxu0 0
        %1387 = vmatprep.subr.bf16.mxu0 0
        %1388 = vmatpush2.bf16.msra.mxu0 0
        %1389 = vmatprep.subr.bf16.mxu0 0
        %1390 = vmatpush2.bf16.msra.mxu0 0
        %1391 = vmatprep.subr.bf16.mxu0 0
        %1392 = vmatpush2.bf16.msra.mxu0 0
        %1393 = vmatprep.subr.bf16.mxu0 0
        %1394 = vmatpush2.bf16.msra.mxu0 0
        %1395 = vmatprep.subr.bf16.mxu0 0
        %1396 = vmatpush2.bf16.msra.mxu0 0
        %1397 = vmatprep.mubr.bf16.mxu0 0
        %1398 = vmatmul.mubr.bf16.gmra.mxu0 %v1363
        %v1399 = vpop.f32.mrf.mxu0
        %v1400 = vadd.f32 %v1356, %v1399
        %v1401 = vpop.f32.mrf.mxu0
        %v1402 = vadd.f32 %v1358, %v1401
        %v1403 = vpop.f32.mrf.mxu0
        %v1404 = vpop.f32.mrf.mxu0
        %1405 = vdwg.mxu0
        %v1407 = vsel %vm1097, %v996, 0
        %1409 = vmatprep.subr.bf16.mxu0 0
        %1410 = vmatpush1.bf16.msra.mxu0 0
        %1411 = vmatprep.subr.bf16.mxu0 0
        %1412 = vmatpush1.bf16.msra.mxu0 0
        %1413 = vmatprep.subr.bf16.mxu0 0
        %1414 = vmatpush1.bf16.msra.mxu0 0
        %1415 = vmatprep.subr.bf16.mxu0 0
        %1416 = vmatpush1.bf16.msra.mxu0 0
        %1417 = vmatprep.subr.bf16.mxu0 0
        %1418 = vmatpush1.bf16.msra.mxu0 0
        %1419 = vmatprep.subr.bf16.mxu0 0
        %1420 = vmatpush1.bf16.msra.mxu0 0
        %1421 = vmatprep.subr.bf16.mxu0 0
        %1422 = vmatpush1.bf16.msra.mxu0 0
        %1423 = vmatprep.subr.bf16.mxu0 %v1258
        %1424 = vmatpush1.bf16.msra.mxu0 %v1255
        %1425 = vmatprep.subr.bf16.mxu0 0
        %1426 = vmatpush2.bf16.msra.mxu0 0
        %1427 = vmatprep.subr.bf16.mxu0 0
        %1428 = vmatpush2.bf16.msra.mxu0 0
        %1429 = vmatprep.subr.bf16.mxu0 0
        %1430 = vmatpush2.bf16.msra.mxu0 0
        %1431 = vmatprep.subr.bf16.mxu0 0
        %1432 = vmatpush2.bf16.msra.mxu0 0
        %1433 = vmatprep.subr.bf16.mxu0 0
        %1434 = vmatpush2.bf16.msra.mxu0 0
        %1435 = vmatprep.subr.bf16.mxu0 0
        %1436 = vmatpush2.bf16.msra.mxu0 0
        %1437 = vmatprep.subr.bf16.mxu0 0
        %1438 = vmatpush2.bf16.msra.mxu0 0
        %1439 = vmatprep.subr.bf16.mxu0 0
        %1440 = vmatpush2.bf16.msra.mxu0 0
        %1441 = vmatprep.mubr.bf16.mxu0 0
        %1442 = vmatmul.mubr.bf16.gmra.mxu0 %v1407
        %v1443 = vpop.f32.mrf.mxu0
        %v1444 = vadd.f32 0.0, %v1443
        %v1445 = vpop.f32.mrf.mxu0
        %v1446 = vadd.f32 0.0, %v1445
        %v1447 = vpop.f32.mrf.mxu0
        %v1448 = vpop.f32.mrf.mxu0
        %1449 = vdwg.mxu0
        %v1450 = vadd.f32 %v1400, %v1444
        %v1451 = vadd.f32 %v1402, %v1446
        %v1453 = vsel %vm1097, %v997, 0
        %v1456 = vsel %vm1101, %v1061, 0
        %v1459 = vsel %vm1101, %v1062, 0
        %1461 = vmatprep.subr.bf16.mxu0 0
        %1462 = vmatpush1.bf16.msra.mxu0 0
        %1463 = vmatprep.subr.bf16.mxu0 0
        %1464 = vmatpush1.bf16.msra.mxu0 0
        %1465 = vmatprep.subr.bf16.mxu0 0
        %1466 = vmatpush1.bf16.msra.mxu0 0
        %1467 = vmatprep.subr.bf16.mxu0 0
        %1468 = vmatpush1.bf16.msra.mxu0 0
        %1469 = vmatprep.subr.bf16.mxu0 0
        %1470 = vmatpush1.bf16.msra.mxu0 0
        %1471 = vmatprep.subr.bf16.mxu0 0
        %1472 = vmatpush1.bf16.msra.mxu0 0
        %1473 = vmatprep.subr.bf16.mxu0 0
        %1474 = vmatpush1.bf16.msra.mxu0 0
        %1475 = vmatprep.subr.bf16.mxu0 %v1459
        %1476 = vmatpush1.bf16.msra.mxu0 %v1456
        %1477 = vmatprep.subr.bf16.mxu0 0
        %1478 = vmatpush2.bf16.msra.mxu0 0
        %1479 = vmatprep.subr.bf16.mxu0 0
        %1480 = vmatpush2.bf16.msra.mxu0 0
        %1481 = vmatprep.subr.bf16.mxu0 0
        %1482 = vmatpush2.bf16.msra.mxu0 0
        %1483 = vmatprep.subr.bf16.mxu0 0
        %1484 = vmatpush2.bf16.msra.mxu0 0
        %1485 = vmatprep.subr.bf16.mxu0 0
        %1486 = vmatpush2.bf16.msra.mxu0 0
        %1487 = vmatprep.subr.bf16.mxu0 0
        %1488 = vmatpush2.bf16.msra.mxu0 0
        %1489 = vmatprep.subr.bf16.mxu0 0
        %1490 = vmatpush2.bf16.msra.mxu0 0
        %1491 = vmatprep.subr.bf16.mxu0 0
        %1492 = vmatpush2.bf16.msra.mxu0 0
        %1493 = vmatprep.mubr.bf16.mxu0 0
        %1494 = vmatmul.mubr.bf16.gmra.mxu0 %v1453
        %v1495 = vpop.f32.mrf.mxu0
        %v1496 = vadd.f32 0.0, %v1495
        %v1497 = vpop.f32.mrf.mxu0
        %v1498 = vadd.f32 0.0, %v1497
        %v1499 = vpop.f32.mrf.mxu0
        %v1500 = vpop.f32.mrf.mxu0
        %1501 = vdwg.mxu0
        %v1502 = vadd.f32 %v1450, %v1496
        %v1503 = vadd.f32 %v1451, %v1498
        %v1504 = vadd.f32 %v1502, %v1306
        %v1505 = vadd.f32 %v1503, %v1306
        %v1506 = vmax.f32 %v1504, 0.0
        %v1507 = vmax.f32 %v1505, 0.0
        %v1509 = vsel %vm1097, %v999, 0
        %1511 = vmatprep.subr.bf16.mxu0 0
        %1512 = vmatpush1.bf16.msra.mxu0 0
        %1513 = vmatprep.subr.bf16.mxu0 0
        %1514 = vmatpush1.bf16.msra.mxu0 0
        %1515 = vmatprep.subr.bf16.mxu0 0
        %1516 = vmatpush1.bf16.msra.mxu0 0
        %1517 = vmatprep.subr.bf16.mxu0 0
        %1518 = vmatpush1.bf16.msra.mxu0 0
        %1519 = vmatprep.subr.bf16.mxu0 0
        %1520 = vmatpush1.bf16.msra.mxu0 0
        %1521 = vmatprep.subr.bf16.mxu0 0
        %1522 = vmatpush1.bf16.msra.mxu0 0
        %1523 = vmatprep.subr.bf16.mxu0 0
        %1524 = vmatpush1.bf16.msra.mxu0 0
        %1525 = vmatprep.subr.bf16.mxu0 %v1258
        %1526 = vmatpush1.bf16.msra.mxu0 %v1255
        %1527 = vmatprep.subr.bf16.mxu0 0
        %1528 = vmatpush2.bf16.msra.mxu0 0
        %1529 = vmatprep.subr.bf16.mxu0 0
        %1530 = vmatpush2.bf16.msra.mxu0 0
        %1531 = vmatprep.subr.bf16.mxu0 0
        %1532 = vmatpush2.bf16.msra.mxu0 0
        %1533 = vmatprep.subr.bf16.mxu0 0
        %1534 = vmatpush2.bf16.msra.mxu0 0
        %1535 = vmatprep.subr.bf16.mxu0 0
        %1536 = vmatpush2.bf16.msra.mxu0 0
        %1537 = vmatprep.subr.bf16.mxu0 0
        %1538 = vmatpush2.bf16.msra.mxu0 0
        %1539 = vmatprep.subr.bf16.mxu0 0
        %1540 = vmatpush2.bf16.msra.mxu0 0
        %1541 = vmatprep.subr.bf16.mxu0 0
        %1542 = vmatpush2.bf16.msra.mxu0 0
        %1543 = vmatprep.mubr.bf16.mxu0 0
        %1544 = vmatmul.mubr.bf16.gmra.mxu0 %v1509
        %v1545 = vpop.f32.mrf.mxu0
        %v1546 = vadd.f32 0.0, %v1545
        %v1547 = vpop.f32.mrf.mxu0
        %v1548 = vadd.f32 0.0, %v1547
        %v1549 = vpop.f32.mrf.mxu0
        %v1550 = vpop.f32.mrf.mxu0
        %1551 = vdwg.mxu0
        %v1553 = vsel %vm1097, %v998, 0
        %1555 = vmatprep.subr.bf16.mxu0 0
        %1556 = vmatpush1.bf16.msra.mxu0 0
        %1557 = vmatprep.subr.bf16.mxu0 0
        %1558 = vmatpush1.bf16.msra.mxu0 0
        %1559 = vmatprep.subr.bf16.mxu0 0
        %1560 = vmatpush1.bf16.msra.mxu0 0
        %1561 = vmatprep.subr.bf16.mxu0 0
        %1562 = vmatpush1.bf16.msra.mxu0 0
        %1563 = vmatprep.subr.bf16.mxu0 0
        %1564 = vmatpush1.bf16.msra.mxu0 0
        %1565 = vmatprep.subr.bf16.mxu0 0
        %1566 = vmatpush1.bf16.msra.mxu0 0
        %1567 = vmatprep.subr.bf16.mxu0 0
        %1568 = vmatpush1.bf16.msra.mxu0 0
        %1569 = vmatprep.subr.bf16.mxu0 %v1206
        %1570 = vmatpush1.bf16.msra.mxu0 %v1203
        %1571 = vmatprep.subr.bf16.mxu0 0
        %1572 = vmatpush2.bf16.msra.mxu0 0
        %1573 = vmatprep.subr.bf16.mxu0 0
        %1574 = vmatpush2.bf16.msra.mxu0 0
        %1575 = vmatprep.subr.bf16.mxu0 0
        %1576 = vmatpush2.bf16.msra.mxu0 0
        %1577 = vmatprep.subr.bf16.mxu0 0
        %1578 = vmatpush2.bf16.msra.mxu0 0
        %1579 = vmatprep.subr.bf16.mxu0 0
        %1580 = vmatpush2.bf16.msra.mxu0 0
        %1581 = vmatprep.subr.bf16.mxu0 0
        %1582 = vmatpush2.bf16.msra.mxu0 0
        %1583 = vmatprep.subr.bf16.mxu0 0
        %1584 = vmatpush2.bf16.msra.mxu0 0
        %1585 = vmatprep.subr.bf16.mxu0 0
        %1586 = vmatpush2.bf16.msra.mxu0 0
        %1587 = vmatprep.mubr.bf16.mxu0 0
        %1588 = vmatmul.mubr.bf16.gmra.mxu0 %v1553
        %v1589 = vpop.f32.mrf.mxu0
        %v1590 = vadd.f32 %v1546, %v1589
        %v1591 = vpop.f32.mrf.mxu0
        %v1592 = vadd.f32 %v1548, %v1591
        %v1593 = vpop.f32.mrf.mxu0
        %v1594 = vpop.f32.mrf.mxu0
        %1595 = vdwg.mxu0
        %v1597 = vsel %vm1097, %v1000, 0
        %v1600 = vsel %vm1101, %v1073, 0
        %v1603 = vsel %vm1101, %v1074, 0
        %1605 = vmatprep.subr.bf16.mxu0 0
        %1606 = vmatpush1.bf16.msra.mxu0 0
        %1607 = vmatprep.subr.bf16.mxu0 0
        %1608 = vmatpush1.bf16.msra.mxu0 0
        %1609 = vmatprep.subr.bf16.mxu0 0
        %1610 = vmatpush1.bf16.msra.mxu0 0
        %1611 = vmatprep.subr.bf16.mxu0 0
        %1612 = vmatpush1.bf16.msra.mxu0 0
        %1613 = vmatprep.subr.bf16.mxu0 0
        %1614 = vmatpush1.bf16.msra.mxu0 0
        %1615 = vmatprep.subr.bf16.mxu0 0
        %1616 = vmatpush1.bf16.msra.mxu0 0
        %1617 = vmatprep.subr.bf16.mxu0 0
        %1618 = vmatpush1.bf16.msra.mxu0 0
        %1619 = vmatprep.subr.bf16.mxu0 %v1603
        %1620 = vmatpush1.bf16.msra.mxu0 %v1600
        %1621 = vmatprep.subr.bf16.mxu0 0
        %1622 = vmatpush2.bf16.msra.mxu0 0
        %1623 = vmatprep.subr.bf16.mxu0 0
        %1624 = vmatpush2.bf16.msra.mxu0 0
        %1625 = vmatprep.subr.bf16.mxu0 0
        %1626 = vmatpush2.bf16.msra.mxu0 0
        %1627 = vmatprep.subr.bf16.mxu0 0
        %1628 = vmatpush2.bf16.msra.mxu0 0
        %1629 = vmatprep.subr.bf16.mxu0 0
        %1630 = vmatpush2.bf16.msra.mxu0 0
        %1631 = vmatprep.subr.bf16.mxu0 0
        %1632 = vmatpush2.bf16.msra.mxu0 0
        %1633 = vmatprep.subr.bf16.mxu0 0
        %1634 = vmatpush2.bf16.msra.mxu0 0
        %1635 = vmatprep.subr.bf16.mxu0 0
        %1636 = vmatpush2.bf16.msra.mxu0 0
        %1637 = vmatprep.mubr.bf16.mxu0 0
        %1638 = vmatmul.mubr.bf16.gmra.mxu0 %v1597
        %v1639 = vpop.f32.mrf.mxu0
        %v1640 = vadd.f32 0.0, %v1639
        %v1641 = vpop.f32.mrf.mxu0
        %v1642 = vadd.f32 0.0, %v1641
        %v1643 = vpop.f32.mrf.mxu0
        %v1644 = vpop.f32.mrf.mxu0
        %1645 = vdwg.mxu0
        %v1646 = vadd.f32 %v1590, %v1640
        %v1647 = vadd.f32 %v1592, %v1642
        %v1649 = vsel %vm1097, %v1001, 0
        %v1652 = vsel %vm1101, %v1083, 0
        %v1655 = vsel %vm1101, %v1084, 0
        %1657 = vmatprep.subr.bf16.mxu0 0
        %1658 = vmatpush1.bf16.msra.mxu0 0
        %1659 = vmatprep.subr.bf16.mxu0 0
        %1660 = vmatpush1.bf16.msra.mxu0 0
        %1661 = vmatprep.subr.bf16.mxu0 0
        %1662 = vmatpush1.bf16.msra.mxu0 0
        %1663 = vmatprep.subr.bf16.mxu0 0
        %1664 = vmatpush1.bf16.msra.mxu0 0
        %1665 = vmatprep.subr.bf16.mxu0 0
        %1666 = vmatpush1.bf16.msra.mxu0 0
        %1667 = vmatprep.subr.bf16.mxu0 0
        %1668 = vmatpush1.bf16.msra.mxu0 0
        %1669 = vmatprep.subr.bf16.mxu0 0
        %1670 = vmatpush1.bf16.msra.mxu0 0
        %1671 = vmatprep.subr.bf16.mxu0 %v1655
        %1672 = vmatpush1.bf16.msra.mxu0 %v1652
        %1673 = vmatprep.subr.bf16.mxu0 0
        %1674 = vmatpush2.bf16.msra.mxu0 0
        %1675 = vmatprep.subr.bf16.mxu0 0
        %1676 = vmatpush2.bf16.msra.mxu0 0
        %1677 = vmatprep.subr.bf16.mxu0 0
        %1678 = vmatpush2.bf16.msra.mxu0 0
        %1679 = vmatprep.subr.bf16.mxu0 0
        %1680 = vmatpush2.bf16.msra.mxu0 0
        %1681 = vmatprep.subr.bf16.mxu0 0
        %1682 = vmatpush2.bf16.msra.mxu0 0
        %1683 = vmatprep.subr.bf16.mxu0 0
        %1684 = vmatpush2.bf16.msra.mxu0 0
        %1685 = vmatprep.subr.bf16.mxu0 0
        %1686 = vmatpush2.bf16.msra.mxu0 0
        %1687 = vmatprep.subr.bf16.mxu0 0
        %1688 = vmatpush2.bf16.msra.mxu0 0
        %1689 = vmatprep.mubr.bf16.mxu0 0
        %1690 = vmatmul.mubr.bf16.gmra.mxu0 %v1649
        %v1691 = vpop.f32.mrf.mxu0
        %v1692 = vadd.f32 0.0, %v1691
        %v1693 = vpop.f32.mrf.mxu0
        %v1694 = vadd.f32 0.0, %v1693
        %v1695 = vpop.f32.mrf.mxu0
        %v1696 = vpop.f32.mrf.mxu0
        %1697 = vdwg.mxu0
        %v1698 = vadd.f32 %v1646, %v1692
        %v1699 = vadd.f32 %v1647, %v1694
        %v1700 = vadd.f32 %v1698, %v1306
        %v1701 = vadd.f32 %v1699, %v1306
        %v1702 = vmax.f32 %v1700, 0.0
        %v1703 = vmax.f32 %v1701, 0.0
        %v1705 = vsel %vm1097, %v1003, 0
        %1707 = vmatprep.subr.bf16.mxu0 0
        %1708 = vmatpush1.bf16.msra.mxu0 0
        %1709 = vmatprep.subr.bf16.mxu0 0
        %1710 = vmatpush1.bf16.msra.mxu0 0
        %1711 = vmatprep.subr.bf16.mxu0 0
        %1712 = vmatpush1.bf16.msra.mxu0 0
        %1713 = vmatprep.subr.bf16.mxu0 0
        %1714 = vmatpush1.bf16.msra.mxu0 0
        %1715 = vmatprep.subr.bf16.mxu0 0
        %1716 = vmatpush1.bf16.msra.mxu0 0
        %1717 = vmatprep.subr.bf16.mxu0 0
        %1718 = vmatpush1.bf16.msra.mxu0 0
        %1719 = vmatprep.subr.bf16.mxu0 0
        %1720 = vmatpush1.bf16.msra.mxu0 0
        %1721 = vmatprep.subr.bf16.mxu0 %v1459
        %1722 = vmatpush1.bf16.msra.mxu0 %v1456
        %1723 = vmatprep.subr.bf16.mxu0 0
        %1724 = vmatpush2.bf16.msra.mxu0 0
        %1725 = vmatprep.subr.bf16.mxu0 0
        %1726 = vmatpush2.bf16.msra.mxu0 0
        %1727 = vmatprep.subr.bf16.mxu0 0
        %1728 = vmatpush2.bf16.msra.mxu0 0
        %1729 = vmatprep.subr.bf16.mxu0 0
        %1730 = vmatpush2.bf16.msra.mxu0 0
        %1731 = vmatprep.subr.bf16.mxu0 0
        %1732 = vmatpush2.bf16.msra.mxu0 0
        %1733 = vmatprep.subr.bf16.mxu0 0
        %1734 = vmatpush2.bf16.msra.mxu0 0
        %1735 = vmatprep.subr.bf16.mxu0 0
        %1736 = vmatpush2.bf16.msra.mxu0 0
        %1737 = vmatprep.subr.bf16.mxu0 0
        %1738 = vmatpush2.bf16.msra.mxu0 0
        %1739 = vmatprep.mubr.bf16.mxu0 0
        %1740 = vmatmul.mubr.bf16.gmra.mxu0 %v1705
        %v1741 = vpop.f32.mrf.mxu0
        %v1742 = vadd.f32 0.0, %v1741
        %v1743 = vpop.f32.mrf.mxu0
        %v1744 = vadd.f32 0.0, %v1743
        %v1745 = vpop.f32.mrf.mxu0
        %v1746 = vpop.f32.mrf.mxu0
        %1747 = vdwg.mxu0
        %v1749 = vsel %vm1097, %v1002, 0
        %1751 = vmatprep.subr.bf16.mxu0 0
        %1752 = vmatpush1.bf16.msra.mxu0 0
        %1753 = vmatprep.subr.bf16.mxu0 0
        %1754 = vmatpush1.bf16.msra.mxu0 0
        %1755 = vmatprep.subr.bf16.mxu0 0
        %1756 = vmatpush1.bf16.msra.mxu0 0
        %1757 = vmatprep.subr.bf16.mxu0 0
        %1758 = vmatpush1.bf16.msra.mxu0 0
        %1759 = vmatprep.subr.bf16.mxu0 0
        %1760 = vmatpush1.bf16.msra.mxu0 0
        %1761 = vmatprep.subr.bf16.mxu0 0
        %1762 = vmatpush1.bf16.msra.mxu0 0
        %1763 = vmatprep.subr.bf16.mxu0 0
        %1764 = vmatpush1.bf16.msra.mxu0 0
        %1765 = vmatprep.subr.bf16.mxu0 %v1258
        %1766 = vmatpush1.bf16.msra.mxu0 %v1255
        %1767 = vmatprep.subr.bf16.mxu0 0
        %1768 = vmatpush2.bf16.msra.mxu0 0
        %1769 = vmatprep.subr.bf16.mxu0 0
        %1770 = vmatpush2.bf16.msra.mxu0 0
        %1771 = vmatprep.subr.bf16.mxu0 0
        %1772 = vmatpush2.bf16.msra.mxu0 0
        %1773 = vmatprep.subr.bf16.mxu0 0
        %1774 = vmatpush2.bf16.msra.mxu0 0
        %1775 = vmatprep.subr.bf16.mxu0 0
        %1776 = vmatpush2.bf16.msra.mxu0 0
        %1777 = vmatprep.subr.bf16.mxu0 0
        %1778 = vmatpush2.bf16.msra.mxu0 0
        %1779 = vmatprep.subr.bf16.mxu0 0
        %1780 = vmatpush2.bf16.msra.mxu0 0
        %1781 = vmatprep.subr.bf16.mxu0 0
        %1782 = vmatpush2.bf16.msra.mxu0 0
        %1783 = vmatprep.mubr.bf16.mxu0 0
        %1784 = vmatmul.mubr.bf16.gmra.mxu0 %v1749
        %v1785 = vpop.f32.mrf.mxu0
        %v1786 = vadd.f32 %v1742, %v1785
        %v1787 = vpop.f32.mrf.mxu0
        %v1788 = vadd.f32 %v1744, %v1787
        %v1789 = vpop.f32.mrf.mxu0
        %v1790 = vpop.f32.mrf.mxu0
        %1791 = vdwg.mxu0
        %v1793 = vsel %vm1097, %v1004, 0
        %1795 = vmatprep.subr.bf16.mxu0 0
        %1796 = vmatpush1.bf16.msra.mxu0 0
        %1797 = vmatprep.subr.bf16.mxu0 0
        %1798 = vmatpush1.bf16.msra.mxu0 0
        %1799 = vmatprep.subr.bf16.mxu0 0
        %1800 = vmatpush1.bf16.msra.mxu0 0
        %1801 = vmatprep.subr.bf16.mxu0 0
        %1802 = vmatpush1.bf16.msra.mxu0 0
        %1803 = vmatprep.subr.bf16.mxu0 0
        %1804 = vmatpush1.bf16.msra.mxu0 0
        %1805 = vmatprep.subr.bf16.mxu0 0
        %1806 = vmatpush1.bf16.msra.mxu0 0
        %1807 = vmatprep.subr.bf16.mxu0 0
        %1808 = vmatpush1.bf16.msra.mxu0 0
        %1809 = vmatprep.subr.bf16.mxu0 %v1655
        %1810 = vmatpush1.bf16.msra.mxu0 %v1652
        %1811 = vmatprep.subr.bf16.mxu0 0
        %1812 = vmatpush2.bf16.msra.mxu0 0
        %1813 = vmatprep.subr.bf16.mxu0 0
        %1814 = vmatpush2.bf16.msra.mxu0 0
        %1815 = vmatprep.subr.bf16.mxu0 0
        %1816 = vmatpush2.bf16.msra.mxu0 0
        %1817 = vmatprep.subr.bf16.mxu0 0
        %1818 = vmatpush2.bf16.msra.mxu0 0
        %1819 = vmatprep.subr.bf16.mxu0 0
        %1820 = vmatpush2.bf16.msra.mxu0 0
        %1821 = vmatprep.subr.bf16.mxu0 0
        %1822 = vmatpush2.bf16.msra.mxu0 0
        %1823 = vmatprep.subr.bf16.mxu0 0
        %1824 = vmatpush2.bf16.msra.mxu0 0
        %1825 = vmatprep.subr.bf16.mxu0 0
        %1826 = vmatpush2.bf16.msra.mxu0 0
        %1827 = vmatprep.mubr.bf16.mxu0 0
        %1828 = vmatmul.mubr.bf16.gmra.mxu0 %v1793
        %v1829 = vpop.f32.mrf.mxu0
        %v1830 = vadd.f32 0.0, %v1829
        %v1831 = vpop.f32.mrf.mxu0
        %v1832 = vadd.f32 0.0, %v1831
        %v1833 = vpop.f32.mrf.mxu0
        %v1834 = vpop.f32.mrf.mxu0
        %1835 = vdwg.mxu0
        %v1836 = vadd.f32 %v1786, %v1830
        %v1837 = vadd.f32 %v1788, %v1832
        %v1839 = vsel %vm1097, %v1005, 0
        %v1842 = vsel %vm1101, %v1095, 0
        %v1845 = vsel %vm1101, %v1096, 0
        %1847 = vmatprep.subr.bf16.mxu0 0
        %1848 = vmatpush1.bf16.msra.mxu0 0
        %1849 = vmatprep.subr.bf16.mxu0 0
        %1850 = vmatpush1.bf16.msra.mxu0 0
        %1851 = vmatprep.subr.bf16.mxu0 0
        %1852 = vmatpush1.bf16.msra.mxu0 0
        %1853 = vmatprep.subr.bf16.mxu0 0
        %1854 = vmatpush1.bf16.msra.mxu0 0
        %1855 = vmatprep.subr.bf16.mxu0 0
        %1856 = vmatpush1.bf16.msra.mxu0 0
        %1857 = vmatprep.subr.bf16.mxu0 0
        %1858 = vmatpush1.bf16.msra.mxu0 0
        %1859 = vmatprep.subr.bf16.mxu0 0
        %1860 = vmatpush1.bf16.msra.mxu0 0
        %1861 = vmatprep.subr.bf16.mxu0 %v1845
        %1862 = vmatpush1.bf16.msra.mxu0 %v1842
        %1863 = vmatprep.subr.bf16.mxu0 0
        %1864 = vmatpush2.bf16.msra.mxu0 0
        %1865 = vmatprep.subr.bf16.mxu0 0
        %1866 = vmatpush2.bf16.msra.mxu0 0
        %1867 = vmatprep.subr.bf16.mxu0 0
        %1868 = vmatpush2.bf16.msra.mxu0 0
        %1869 = vmatprep.subr.bf16.mxu0 0
        %1870 = vmatpush2.bf16.msra.mxu0 0
        %1871 = vmatprep.subr.bf16.mxu0 0
        %1872 = vmatpush2.bf16.msra.mxu0 0
        %1873 = vmatprep.subr.bf16.mxu0 0
        %1874 = vmatpush2.bf16.msra.mxu0 0
        %1875 = vmatprep.subr.bf16.mxu0 0
        %1876 = vmatpush2.bf16.msra.mxu0 0
        %1877 = vmatprep.subr.bf16.mxu0 0
        %1878 = vmatpush2.bf16.msra.mxu0 0
        %1879 = vmatprep.mubr.bf16.mxu0 0
        %1880 = vmatmul.mubr.bf16.gmra.mxu0 %v1839
        %v1881 = vpop.f32.mrf.mxu0
        %v1882 = vadd.f32 0.0, %v1881
        %v1883 = vpop.f32.mrf.mxu0
        %v1884 = vadd.f32 0.0, %v1883
        %v1885 = vpop.f32.mrf.mxu0
        %v1886 = vpop.f32.mrf.mxu0
        %1887 = vdwg.mxu0
        %v1888 = vadd.f32 %v1836, %v1882
        %v1889 = vadd.f32 %v1837, %v1884
        %v1890 = vadd.f32 %v1888, %v1306
        %v1891 = vadd.f32 %v1889, %v1306
        %v1892 = vmax.f32 %v1890, 0.0
        %v1893 = vmax.f32 %v1891, 0.0
        %v1894 = vpack.c.bf16 %v1310, %v1310
        %v1895 = vpack.c.bf16 %v1311, %v1311
        %1897 = vset.pattern.permute.xlu0 0
        %1898 = vperm.xlu0 %1897, %v334
        %v1899 = vpop.permute.xlu0 %1898
        %v1902 = vsel %vm1097, %v333, 0
        %v1905 = vsel %vm1101, %v1894, 0
        %v1908 = vsel %vm1101, %v1895, 0
        %1910 = vmatprep.subr.bf16.mxu0 0
        %1911 = vmatpush1.bf16.msra.mxu0 0
        %1912 = vmatprep.subr.bf16.mxu0 0
        %1913 = vmatpush1.bf16.msra.mxu0 0
        %1914 = vmatprep.subr.bf16.mxu0 0
        %1915 = vmatpush1.bf16.msra.mxu0 0
        %1916 = vmatprep.subr.bf16.mxu0 0
        %1917 = vmatpush1.bf16.msra.mxu0 0
        %1918 = vmatprep.subr.bf16.mxu0 0
        %1919 = vmatpush1.bf16.msra.mxu0 0
        %1920 = vmatprep.subr.bf16.mxu0 0
        %1921 = vmatpush1.bf16.msra.mxu0 0
        %1922 = vmatprep.subr.bf16.mxu0 0
        %1923 = vmatpush1.bf16.msra.mxu0 0
        %1924 = vmatprep.subr.bf16.mxu0 %v1908
        %1925 = vmatpush1.bf16.msra.mxu0 %v1905
        %1926 = vmatprep.subr.bf16.mxu0 0
        %1927 = vmatpush2.bf16.msra.mxu0 0
        %1928 = vmatprep.subr.bf16.mxu0 0
        %1929 = vmatpush2.bf16.msra.mxu0 0
        %1930 = vmatprep.subr.bf16.mxu0 0
        %1931 = vmatpush2.bf16.msra.mxu0 0
        %1932 = vmatprep.subr.bf16.mxu0 0
        %1933 = vmatpush2.bf16.msra.mxu0 0
        %1934 = vmatprep.subr.bf16.mxu0 0
        %1935 = vmatpush2.bf16.msra.mxu0 0
        %1936 = vmatprep.subr.bf16.mxu0 0
        %1937 = vmatpush2.bf16.msra.mxu0 0
        %1938 = vmatprep.subr.bf16.mxu0 0
        %1939 = vmatpush2.bf16.msra.mxu0 0
        %1940 = vmatprep.subr.bf16.mxu0 0
        %1941 = vmatpush2.bf16.msra.mxu0 0
        %1942 = vmatprep.mubr.bf16.mxu0 0
        %1943 = vmatmul.mubr.bf16.gmra.mxu0 %v1902
        %v1944 = vpop.f32.mrf.mxu0
        %v1945 = vadd.f32 %v1899, %v1944
        %v1946 = vpop.f32.mrf.mxu0
        %v1947 = vadd.f32 %v1899, %v1946
        %v1948 = vpop.f32.mrf.mxu0
        %v1949 = vpop.f32.mrf.mxu0
        %1950 = vdwg.mxu0
        %v1953 = vcombine.low %v1945, %v1947
        %1955 = vst [vmem:[%s326] sm:$0x77] %v1953
        %v1956 = vpack.c.bf16 %v1506, %v1506
        %v1957 = vpack.c.bf16 %v1507, %v1507
        %v1959 = vsel %vm1101, %v1956, 0
        %v1962 = vsel %vm1101, %v1957, 0
        %1964 = vmatprep.subr.bf16.mxu0 0
        %1965 = vmatpush1.bf16.msra.mxu0 0
        %1966 = vmatprep.subr.bf16.mxu0 0
        %1967 = vmatpush1.bf16.msra.mxu0 0
        %1968 = vmatprep.subr.bf16.mxu0 0
        %1969 = vmatpush1.bf16.msra.mxu0 0
        %1970 = vmatprep.subr.bf16.mxu0 0
        %1971 = vmatpush1.bf16.msra.mxu0 0
        %1972 = vmatprep.subr.bf16.mxu0 0
        %1973 = vmatpush1.bf16.msra.mxu0 0
        %1974 = vmatprep.subr.bf16.mxu0 0
        %1975 = vmatpush1.bf16.msra.mxu0 0
        %1976 = vmatprep.subr.bf16.mxu0 0
        %1977 = vmatpush1.bf16.msra.mxu0 0
        %1978 = vmatprep.subr.bf16.mxu0 %v1962
        %1979 = vmatpush1.bf16.msra.mxu0 %v1959
        %1980 = vmatprep.subr.bf16.mxu0 0
        %1981 = vmatpush2.bf16.msra.mxu0 0
        %1982 = vmatprep.subr.bf16.mxu0 0
        %1983 = vmatpush2.bf16.msra.mxu0 0
        %1984 = vmatprep.subr.bf16.mxu0 0
        %1985 = vmatpush2.bf16.msra.mxu0 0
        %1986 = vmatprep.subr.bf16.mxu0 0
        %1987 = vmatpush2.bf16.msra.mxu0 0
        %1988 = vmatprep.subr.bf16.mxu0 0
        %1989 = vmatpush2.bf16.msra.mxu0 0
        %1990 = vmatprep.subr.bf16.mxu0 0
        %1991 = vmatpush2.bf16.msra.mxu0 0
        %1992 = vmatprep.subr.bf16.mxu0 0
        %1993 = vmatpush2.bf16.msra.mxu0 0
        %1994 = vmatprep.subr.bf16.mxu0 0
        %1995 = vmatpush2.bf16.msra.mxu0 0
        %1996 = vmatprep.mubr.bf16.mxu0 0
        %1997 = vmatmul.mubr.bf16.gmra.mxu0 %v1902
        %v1998 = vpop.f32.mrf.mxu0
        %v1999 = vadd.f32 %v1899, %v1998
        %v2000 = vpop.f32.mrf.mxu0
        %v2001 = vadd.f32 %v1899, %v2000
        %v2002 = vpop.f32.mrf.mxu0
        %v2003 = vpop.f32.mrf.mxu0
        %2004 = vdwg.mxu0
        %v2007 = vcombine.low %v1999, %v2001
        %s2009 = scalar_lea.vmem %s326, 8
        %2010 = vst [vmem:[%s2009] sm:$0x77] %v2007
        %v2011 = vpack.c.bf16 %v1702, %v1702
        %v2012 = vpack.c.bf16 %v1703, %v1703
        %v2014 = vsel %vm1101, %v2011, 0
        %v2017 = vsel %vm1101, %v2012, 0
        %2019 = vmatprep.subr.bf16.mxu0 0
        %2020 = vmatpush1.bf16.msra.mxu0 0
        %2021 = vmatprep.subr.bf16.mxu0 0
        %2022 = vmatpush1.bf16.msra.mxu0 0
        %2023 = vmatprep.subr.bf16.mxu0 0
        %2024 = vmatpush1.bf16.msra.mxu0 0
        %2025 = vmatprep.subr.bf16.mxu0 0
        %2026 = vmatpush1.bf16.msra.mxu0 0
        %2027 = vmatprep.subr.bf16.mxu0 0
        %2028 = vmatpush1.bf16.msra.mxu0 0
        %2029 = vmatprep.subr.bf16.mxu0 0
        %2030 = vmatpush1.bf16.msra.mxu0 0
        %2031 = vmatprep.subr.bf16.mxu0 0
        %2032 = vmatpush1.bf16.msra.mxu0 0
        %2033 = vmatprep.subr.bf16.mxu0 %v2017
        %2034 = vmatpush1.bf16.msra.mxu0 %v2014
        %2035 = vmatprep.subr.bf16.mxu0 0
        %2036 = vmatpush2.bf16.msra.mxu0 0
        %2037 = vmatprep.subr.bf16.mxu0 0
        %2038 = vmatpush2.bf16.msra.mxu0 0
        %2039 = vmatprep.subr.bf16.mxu0 0
        %2040 = vmatpush2.bf16.msra.mxu0 0
        %2041 = vmatprep.subr.bf16.mxu0 0
        %2042 = vmatpush2.bf16.msra.mxu0 0
        %2043 = vmatprep.subr.bf16.mxu0 0
        %2044 = vmatpush2.bf16.msra.mxu0 0
        %2045 = vmatprep.subr.bf16.mxu0 0
        %2046 = vmatpush2.bf16.msra.mxu0 0
        %2047 = vmatprep.subr.bf16.mxu0 0
        %2048 = vmatpush2.bf16.msra.mxu0 0
        %2049 = vmatprep.subr.bf16.mxu0 0
        %2050 = vmatpush2.bf16.msra.mxu0 0
        %2051 = vmatprep.mubr.bf16.mxu0 0
        %2052 = vmatmul.mubr.bf16.gmra.mxu0 %v1902
        %v2053 = vpop.f32.mrf.mxu0
        %v2054 = vadd.f32 %v1899, %v2053
        %v2055 = vpop.f32.mrf.mxu0
        %v2056 = vadd.f32 %v1899, %v2055
        %v2057 = vpop.f32.mrf.mxu0
        %v2058 = vpop.f32.mrf.mxu0
        %2059 = vdwg.mxu0
        %v2062 = vcombine.low %v2054, %v2056
        %s2064 = scalar_lea.vmem %s326, 16
        %2065 = vst [vmem:[%s2064] sm:$0x77] %v2062
        %v2066 = vpack.c.bf16 %v1892, %v1892
        %v2067 = vpack.c.bf16 %v1893, %v1893
        %v2069 = vsel %vm1101, %v2066, 0
        %v2072 = vsel %vm1101, %v2067, 0
        %2074 = vmatprep.subr.bf16.mxu0 0
        %2075 = vmatpush1.bf16.msra.mxu0 0
        %2076 = vmatprep.subr.bf16.mxu0 0
        %2077 = vmatpush1.bf16.msra.mxu0 0
        %2078 = vmatprep.subr.bf16.mxu0 0
        %2079 = vmatpush1.bf16.msra.mxu0 0
        %2080 = vmatprep.subr.bf16.mxu0 0
        %2081 = vmatpush1.bf16.msra.mxu0 0
        %2082 = vmatprep.subr.bf16.mxu0 0
        %2083 = vmatpush1.bf16.msra.mxu0 0
        %2084 = vmatprep.subr.bf16.mxu0 0
        %2085 = vmatpush1.bf16.msra.mxu0 0
        %2086 = vmatprep.subr.bf16.mxu0 0
        %2087 = vmatpush1.bf16.msra.mxu0 0
        %2088 = vmatprep.subr.bf16.mxu0 %v2072
        %2089 = vmatpush1.bf16.msra.mxu0 %v2069
        %2090 = vmatprep.subr.bf16.mxu0 0
        %2091 = vmatpush2.bf16.msra.mxu0 0
        %2092 = vmatprep.subr.bf16.mxu0 0
        %2093 = vmatpush2.bf16.msra.mxu0 0
        %2094 = vmatprep.subr.bf16.mxu0 0
        %2095 = vmatpush2.bf16.msra.mxu0 0
        %2096 = vmatprep.subr.bf16.mxu0 0
        %2097 = vmatpush2.bf16.msra.mxu0 0
        %2098 = vmatprep.subr.bf16.mxu0 0
        %2099 = vmatpush2.bf16.msra.mxu0 0
        %2100 = vmatprep.subr.bf16.mxu0 0
        %2101 = vmatpush2.bf16.msra.mxu0 0
        %2102 = vmatprep.subr.bf16.mxu0 0
        %2103 = vmatpush2.bf16.msra.mxu0 0
        %2104 = vmatprep.subr.bf16.mxu0 0
        %2105 = vmatpush2.bf16.msra.mxu0 0
        %2106 = vmatprep.mubr.bf16.mxu0 0
        %2107 = vmatmul.mubr.bf16.gmra.mxu0 %v1902
        %v2108 = vpop.f32.mrf.mxu0
        %v2109 = vadd.f32 %v1899, %v2108
        %v2110 = vpop.f32.mrf.mxu0
        %v2111 = vadd.f32 %v1899, %v2110
        %v2112 = vpop.f32.mrf.mxu0
        %v2113 = vpop.f32.mrf.mxu0
        %2114 = vdwg.mxu0
        %v2117 = vcombine.low %v2109, %v2111
        %s2119 = scalar_lea.vmem %s326, 24
        %2120 = vst [vmem:[%s2119] sm:$0x77] %v2117
        %v2121 = vadd.f32 %v1310, %v1506
        %v2122 = vadd.f32 %v1311, %v1507
        %v2123 = vadd.f32 %v2121, %v1702
        %v2124 = vadd.f32 %v2122, %v1703
        %v2125 = vadd.f32 %v2123, %v1892
        %v2126 = vadd.f32 %v2124, %v1893
        %v2127 = vmul.f32 %v2125, 0.25
        %v2128 = vmul.f32 %v2126, 0.25
        %2129 = vst [vmem:[%s331] sm:$0xff] %v2127
        %2130 = vst [vmem:[%s331 + $0x8] sm:$0xff] %v2128
        %p2131 = scmp.lt.s32.totalorder %s21, 1
        %s2132 = scalar_select %p2131, %s21, 1
        %s2133 = smul.addr %s2132, 8
        %s2134 = smul.addr %s2133, 4
        %s2135 = scalar_lea.vmem %s7, %s2134
        %p2136 = scmp.lt.s32.totalorder %s21, 1
        %s2137 = scalar_select %p2136, %s21, 1
        %s2138 = smul.addr %s2137, 2
        %s2139 = smul.addr %s2138, 8
        %s2140 = scalar_lea.vmem %s8, %s2139
        // Predicated region
        $region53: #{map_seg_head_forward.1} parent=47 // pred_check
          %p2141 = pneg %p191
        $region54: #{map_seg_head_forward.1} parent=47 // pred_check_branch
          %2143 = sbr.rel (%p2141) target = $region56
        $region55: #{map_seg_head_forward.1} parent=47 // pred_region
          _
        $region56: #{map_seg_head_forward.1} parent=47 // pred_fallthru
          _
        // Predicated region
        $region57: #{map_seg_head_forward.1} parent=47 // pred_check
          %p2144 = pneg %p217
        $region58: #{map_seg_head_forward.1} parent=47 // pred_check_branch
          %2146 = sbr.rel (%p2144) target = $region60
        $region59: #{map_seg_head_forward.1} parent=47 // pred_region
          _
        $region60: #{map_seg_head_forward.1} parent=47 // pred_fallthru
          _
      $region48: #{map_seg_head_forward.1} parent=5 // pred_fallthru
        _
      %p2147 = scmp.le.s32.totalorder 2, %s16
      // Predicated region
      $region61: #{map_seg_head_forward.1} parent=5 // pred_check
        %p2148 = pneg %p2147
      $region62: #{map_seg_head_forward.1} parent=5 // pred_check_branch
        %2150 = sbr.rel (%p2148) target = $region64
      $region63: #{map_seg_head_forward.1} parent=5 // pred_region
        %s2151 = ssub.s32 %s16, 2
        // Predicated region
        $region65: #{map_seg_head_forward.1} parent=63 // pred_check
          %p2152 = pneg %p197
        $region66: #{map_seg_head_forward.1} parent=63 // pred_check_branch
          %2154 = sbr.rel (%p2152) target = $region68
        $region67: #{map_seg_head_forward.1} parent=63 // pred_region
          %p2155 = scmp.lt.s32.totalorder %s22, 1
          %s2156 = scalar_select %p2155, %s22, 1
          %s2157 = smul.addr %s2156, 8
          %s2158 = smul.addr %s2157, 4
          %s2159 = scalar_lea.vmem %s7, %s2158
        $region68: #{map_seg_head_forward.1} parent=63 // pred_fallthru
          _
        // Predicated region
        $region69: #{map_seg_head_forward.1} parent=63 // pred_check
          %p2160 = pneg %p223
        $region70: #{map_seg_head_forward.1} parent=63 // pred_check_branch
          %2162 = sbr.rel (%p2160) target = $region72
        $region71: #{map_seg_head_forward.1} parent=63 // pred_region
          %p2163 = scmp.lt.s32.totalorder %s22, 1
          %s2164 = scalar_select %p2163, %s22, 1
          %s2165 = smul.addr %s2164, 2
          %s2166 = smul.addr %s2165, 8
          %s2167 = scalar_lea.vmem %s8, %s2166
        $region72: #{map_seg_head_forward.1} parent=63 // pred_fallthru
          _
      $region64: #{map_seg_head_forward.1} parent=5 // pred_fallthru
        _
    $region6: #{map_seg_head_forward.1} parent=1 // loop_footer
      %s20 = sadd.s32 1, %s16
    $region7: #{map_seg_head_forward.1} parent=1 // loop_footer_branch
      %15 = sbr.rel target = $region3
    $region8: #{map_seg_head_forward.1} parent=1 // loop_exit
      _
    %2168 = vsyncpa [#allocation3], 1
    %s2169 = scalar_lea.sflag [#allocation3], 1
    %2170 = vsyncpa %s2169, 1

</llo_original>
